<compile_context>
chip_gen: v7x
topology: tpu7x:2x2x1
jax: 0.10.0
libtpu: 0.0.40
codegen_flags: <defaults>
</compile_context>

<pallas_src>
import jax
import jax.numpy as jnp
from jax.experimental import pallas as pl
from jax.experimental.pallas import tpu as pltpu


def gal_linear_kernel(scalars_ref, x_ref, nrange_ref, wcoef_ref, bcoef_ref,
                      out_ref, wT_ref, bias_ref):
    """Fused Galerkin-linear forward for one (time-step, batch-tile) grid cell.

    scalars_ref : SMEM (2 + T,)                    = [dilation, shift, t_0..t_{T-1}]
    x_ref       : VMEM (bm, in_features)           batch tile (time dim squeezed)
    nrange_ref  : VMEM (deg, 1, 1)                 eigen-basis frequencies
    wcoef_ref   : VMEM (2, deg, in_features, out)  packed [cos, sin] weight coeffs
    bcoef_ref   : VMEM (2, deg, 1, out)            packed [cos, sin] bias coeffs
    out_ref     : VMEM (bm, out)
    wT_ref      : VMEM scratch (in_features, out)  cached assembled weight^T
    bias_ref    : VMEM scratch (1, out)            cached assembled bias
    """
    ti = pl.program_id(0)                     # time-step index
    bi = pl.program_id(1)                     # batch-tile index

    # Assemble W^T / bias once per time step (first batch tile of that step);
    # subsequent batch tiles reuse the VMEM scratch.  The batch axis is
    # "arbitrary" (sequential per core) so bi == 0 always runs first.
    @pl.when(bi == 0)
    def _assemble():
        dilation = scalars_ref[0]
        shift = scalars_ref[1]
        t = scalars_ref[2 + ti]
        s = t * dilation + shift              # scalar

        arg = s * nrange_ref[...]             # (deg, 1, 1)
        cs = jnp.cos(arg)                     # EUP transcendentals
        sn = jnp.sin(arg)

        # Upcast covers optional bf16-stored coefficients (v5e has no bf16 VALU).
        # TODO(synk): for deg >= ~32 switch to an MXU contraction
        #             (1, 2*deg) @ (2*deg, in*out) instead of the VPU reduction.
        w_cos = wcoef_ref[0].astype(jnp.float32)  # (deg, in, out)
        w_sin = wcoef_ref[1].astype(jnp.float32)
        b_cos = bcoef_ref[0].astype(jnp.float32)  # (deg, 1, out)
        b_sin = bcoef_ref[1].astype(jnp.float32)

        wT_ref[...] = jnp.sum(cs * w_cos + sn * w_sin, axis=0)    # (in, out) == weight.T
        bias_ref[...] = jnp.sum(cs * b_cos + sn * b_sin, axis=0)  # (1, out)

    x = x_ref[...].astype(jnp.float32)                            # (bm, in)
    out_ref[...] = (
        jnp.dot(x, wT_ref[...], preferred_element_type=jnp.float32) + bias_ref[...]
    ).astype(out_ref.dtype)


def _relayout_coeffs(coeffs, in_features, out_features, deg, coeff_dtype=jnp.float32):
    """Host-side glue: (in+1)*out x deg x 2  ->  packed weight / bias slabs."""
    n_eig = 2
    assert coeffs.shape == ((in_features + 1) * out_features, deg, n_eig)
    c_w = coeffs[: in_features * out_features].reshape(
        out_features, in_features, deg, n_eig)                 # [o, i, d, e]
    c_b = coeffs[in_features * out_features:]                   # [o, d, e]
    wcoef = jnp.transpose(c_w, (3, 2, 1, 0)).astype(coeff_dtype)              # (2, deg, in, out)
    bcoef = jnp.transpose(c_b, (2, 1, 0))[:, :, None, :].astype(coeff_dtype)  # (2, deg, 1, out)
    return wcoef, bcoef


def gal_linear_steps(xs, ts, coeffs, dilation, shift, *,
                     in_features, out_features, deg,
                     batch_tile=128, coeff_dtype=jnp.float32):
    """Fused multi-step GalLinear: evaluates T (x_k, t_k) pairs in one pallas_call.

    xs : (T, N, in_features)   ts : (T,)   ->   (T, N, out_features)
    """
    T, N, F = xs.shape
    assert F == in_features
    assert ts.shape == (T,)

    wcoef, bcoef = _relayout_coeffs(coeffs, in_features, out_features, deg, coeff_dtype)
    # torch.linspace(0, deg, deg): deg points, endpoint inclusive.
    n_range = jnp.linspace(0.0, float(deg), deg, dtype=jnp.float32).reshape(deg, 1, 1)

    # Batch tiling: fall back to the full batch if it does not split evenly
    # into `batch_tile`-row tiles.
    bm = batch_tile if (N % batch_tile == 0) else N

    scalars = jnp.concatenate([
        jnp.reshape(jnp.asarray(dilation, jnp.float32), (1,)),
        jnp.reshape(jnp.asarray(shift, jnp.float32), (1,)),
        jnp.asarray(ts, jnp.float32).reshape(T),
    ]).astype(jnp.float32)                                      # (2 + T,)

    grid = (T, N // bm)

    grid_spec = pltpu.PrefetchScalarGridSpec(
        num_scalar_prefetch=0,
        grid=grid,
        in_specs=[
            # [dilation, shift, t_0..t_{T-1}] — whole array in SMEM.
            pl.BlockSpec(memory_space=pltpu.MemorySpace.SMEM),
            # x batch tile, pipelined over the (time, batch) grid.
            pl.BlockSpec((pl.Squeezed(), bm, in_features),
                         lambda ti, bi: (ti, bi, 0)),
            # Frequencies + coefficient slabs: constant index_map -> DMA'd once
            # per core and reused for every grid step.
            pl.BlockSpec((deg, 1, 1), lambda ti, bi: (0, 0, 0)),
            pl.BlockSpec((2, deg, in_features, out_features),
                         lambda ti, bi: (0, 0, 0, 0)),
            pl.BlockSpec((2, deg, 1, out_features),
                         lambda ti, bi: (0, 0, 0, 0)),
        ],
        out_specs=pl.BlockSpec((pl.Squeezed(), bm, out_features),
                               lambda ti, bi: (ti, bi, 0)),
        scratch_shapes=[
            pltpu.VMEM((in_features, out_features), jnp.float32),  # cached W^T
            pltpu.VMEM((1, out_features), jnp.float32),            # cached bias
        ],
    )

    return pl.pallas_call(
        gal_linear_kernel,
        out_shape=jax.ShapeDtypeStruct((T, N, out_features), jnp.float32),
        grid_spec=grid_spec,
        compiler_params=pltpu.CompilerParams(
            # Time axis can shard across cores; batch axis is sequential so the
            # bi == 0 weight-assembly cache is always populated before reuse.
            dimension_semantics=("parallel", "arbitrary")),
    )(scalars, xs.astype(jnp.float32), n_range, wcoef, bcoef)


def gal_linear(x, coeffs, dilation, shift, *, in_features, out_features, deg,
               coeff_dtype=jnp.float32):
    """Module-forward semantics: x is (N, in_features + 1), t = x[-1, -1]."""
    t = x[-1, -1]
    x_in = x[:, :in_features]
    out = gal_linear_steps(x_in[None], t[None], coeffs, dilation, shift,
                           in_features=in_features, out_features=out_features,
                           deg=deg, coeff_dtype=coeff_dtype)
    return out[0]


def gal_linear_reference(x, coeffs, dilation, shift, *, in_features, out_features, deg):
    """Plain-JAX transcription of the PyTorch forward (for correctness check)."""
    t = x[-1, -1]
    x_in = x[:, :-1]
    n_range = jnp.linspace(0.0, float(deg), deg, dtype=jnp.float32)
    s = t * dilation[0] + shift[0]
    basis = [jnp.cos(s * n_range), jnp.sin(s * n_range)]
    b_mat = jnp.concatenate([jnp.diag(basis[0]), jnp.diag(basis[1])], axis=1)  # (deg, 2deg)
    c_mat = jnp.concatenate([coeffs[:, :, 0], coeffs[:, :, 1]], axis=1).T       # (2deg, M)
    w = (b_mat @ c_mat).sum(0)
    weight = w[: in_features * out_features].reshape(out_features, in_features)
    bias = w[in_features * out_features:].reshape(out_features)
    return x_in @ weight.T + bias


if __name__ == "__main__":
    in_features, out_features, deg, n_eig = 8, 16, 5, 2
    batch = 8

    key = jax.random.PRNGKey(0)
    k1, k2, k3, _ = jax.random.split(key, 4)
    x = jax.random.normal(k1, (batch, in_features + 1), dtype=jnp.float32)
    # NOTE: the torch module's reset_parameters() zeros the coeffs (trivial all-zero
    # output); use small deterministic random values so the full compute path runs.
    coeffs = 0.1 * jax.random.normal(
        k2, ((in_features + 1) * out_features, deg, n_eig), dtype=jnp.float32)
    dilation = jnp.array([1.25], dtype=jnp.float32)   # module default is ones(1)
    shift = jnp.array([0.3], dtype=jnp.float32)       # module default is zeros(1)

    # --- single module-forward (T = 1 path) ---
    out = gal_linear(x, coeffs, dilation, shift,
                     in_features=in_features, out_features=out_features, deg=deg)
    out = jax.block_until_ready(out)
    ref = gal_linear_reference(x, coeffs, dilation, shift,
                               in_features=in_features, out_features=out_features, deg=deg)
    assert out.shape == (batch, out_features)
    assert jnp.allclose(out, ref, rtol=1e-5, atol=1e-5)

    # --- fused multi-step path (amortizes launch overhead + coefficient DMAs) ---
    T = 4
    xs = jax.random.normal(k3, (T, batch, in_features), dtype=jnp.float32)
    ts = jnp.linspace(0.0, 1.0, T, dtype=jnp.float32)
    outs = gal_linear_steps(xs, ts, coeffs, dilation, shift,
                            in_features=in_features, out_features=out_features, deg=deg)
    outs = jax.block_until_ready(outs)
    for k in range(T):
        x_full = jnp.concatenate(
            [xs[k], jnp.full((batch, 1), ts[k], dtype=jnp.float32)], axis=1)
        ref_k = gal_linear_reference(x_full, coeffs, dilation, shift,
                                     in_features=in_features,
                                     out_features=out_features, deg=deg)
        assert jnp.allclose(outs[k], ref_k, rtol=1e-5, atol=1e-5)

    print("KERNEL_OK")
</pallas_src>

<mosaic_0001>
module attributes {stable_mosaic.version = 11 : i64} {
  func.func @gal_linear_kernel(%arg0: i32, %arg1: i32, %arg2: memref<3xf32, #tpu.memory_space<smem>>, %arg3: memref<1x8x8xf32, #tpu.memory_space<vmem>>, %arg4: memref<5x1x1xf32, #tpu.memory_space<vmem>>, %arg5: memref<2x5x8x16xf32, #tpu.memory_space<vmem>>, %arg6: memref<2x5x1x16xf32, #tpu.memory_space<vmem>>, %arg7: memref<1x8x16xf32, #tpu.memory_space<vmem>>, %arg8: memref<8x16xf32, #tpu.memory_space<vmem>>, %arg9: memref<1x16xf32, #tpu.memory_space<vmem>>) attributes {dimension_semantics = [#tpu.dimension_semantics<parallel>, #tpu.dimension_semantics<arbitrary>], iteration_bounds = array<i64: 1, 1>, scalar_prefetch = 0 : i64, scratch_operands = 2 : i64, tpu.core_type = #tpu.core_type<tc>, window_params = [{transform_indices = @transform_0, window_bounds = array<i64: 3>}, {transform_indices = @transform_1, window_bounds = array<i64: 1, 8, 8>}, {pipeline_mode = #tpu.pipeline_mode<synchronous>, transform_indices = @transform_2, window_bounds = array<i64: 5, 1, 1>}, {pipeline_mode = #tpu.pipeline_mode<synchronous>, transform_indices = @transform_3, window_bounds = array<i64: 2, 5, 8, 16>}, {pipeline_mode = #tpu.pipeline_mode<synchronous>, transform_indices = @transform_4, window_bounds = array<i64: 2, 5, 1, 16>}, {transform_indices = @transform_5, window_bounds = array<i64: 1, 8, 16>}]} {
    %c0_i32 = arith.constant 0 : i32
    %0 = arith.cmpi eq, %arg1, %c0_i32 : i32
    %1 = arith.extui %0 : i1 to i32
    %c0_i32_0 = arith.constant 0 : i32
    %2 = arith.cmpi ne, %1, %c0_i32_0 : i32
    scf.if %2 {
      %c0_10 = arith.constant 0 : index
      %13 = memref.load %arg2[%c0_10] : memref<3xf32, #tpu.memory_space<smem>>
      %c1 = arith.constant 1 : index
      %14 = memref.load %arg2[%c1] : memref<3xf32, #tpu.memory_space<smem>>
      %c2_i32 = arith.constant 2 : i32
      %15 = arith.addi %c2_i32, %arg0 : i32
      %16 = arith.index_cast %15 : i32 to index
      %17 = memref.load %arg2[%16] : memref<3xf32, #tpu.memory_space<smem>>
      %18 = arith.mulf %17, %13 : f32
      %19 = arith.addf %18, %14 : f32
      %c0_11 = arith.constant 0 : index
      %c0_12 = arith.constant 0 : index
      %c0_13 = arith.constant 0 : index
      %20 = vector.load %arg4[%c0_11, %c0_12, %c0_13] : memref<5x1x1xf32, #tpu.memory_space<vmem>>, vector<5x1x1xf32>
      %21 = vector.broadcast %19 : f32 to vector<5x1x1xf32>
      %22 = arith.mulf %21, %20 : vector<5x1x1xf32>
      %23 = math.cos %22 : vector<5x1x1xf32>
      %24 = math.sin %22 : vector<5x1x1xf32>
      %c0_14 = arith.constant 0 : index
      %c0_15 = arith.constant 0 : index
      %c0_16 = arith.constant 0 : index
      %c0_17 = arith.constant 0 : index
      %25 = vector.load %arg5[%c0_14, %c0_15, %c0_16, %c0_17] : memref<2x5x8x16xf32, #tpu.memory_space<vmem>>, vector<1x5x8x16xf32>
      %26 = vector.shape_cast %25 : vector<1x5x8x16xf32> to vector<5x8x16xf32>
      %c1_18 = arith.constant 1 : index
      %c0_19 = arith.constant 0 : index
      %c0_20 = arith.constant 0 : index
      %c0_21 = arith.constant 0 : index
      %27 = vector.load %arg5[%c1_18, %c0_19, %c0_20, %c0_21] : memref<2x5x8x16xf32, #tpu.memory_space<vmem>>, vector<1x5x8x16xf32>
      %28 = vector.shape_cast %27 : vector<1x5x8x16xf32> to vector<5x8x16xf32>
      %c0_22 = arith.constant 0 : index
      %c0_23 = arith.constant 0 : index
      %c0_24 = arith.constant 0 : index
      %c0_25 = arith.constant 0 : index
      %29 = vector.load %arg6[%c0_22, %c0_23, %c0_24, %c0_25] : memref<2x5x1x16xf32, #tpu.memory_space<vmem>>, vector<1x5x1x16xf32>
      %30 = vector.shape_cast %29 : vector<1x5x1x16xf32> to vector<5x1x16xf32>
      %c1_26 = arith.constant 1 : index
      %c0_27 = arith.constant 0 : index
      %c0_28 = arith.constant 0 : index
      %c0_29 = arith.constant 0 : index
      %31 = vector.load %arg6[%c1_26, %c0_27, %c0_28, %c0_29] : memref<2x5x1x16xf32, #tpu.memory_space<vmem>>, vector<1x5x1x16xf32>
      %32 = vector.shape_cast %31 : vector<1x5x1x16xf32> to vector<5x1x16xf32>
      %33 = vector.broadcast %23 : vector<5x1x1xf32> to vector<5x8x16xf32>
      %34 = arith.mulf %33, %26 : vector<5x8x16xf32>
      %35 = vector.broadcast %24 : vector<5x1x1xf32> to vector<5x8x16xf32>
      %36 = arith.mulf %35, %28 : vector<5x8x16xf32>
      %37 = arith.addf %34, %36 : vector<5x8x16xf32>
      %cst_30 = arith.constant dense<0.000000e+00> : vector<8x16xf32>
      %38 = vector.multi_reduction <add>, %37, %cst_30 [0] : vector<5x8x16xf32> to vector<8x16xf32>
      %c0_31 = arith.constant 0 : index
      %c0_32 = arith.constant 0 : index
      %39 = vector.load %arg8[%c0_31, %c0_32] : memref<8x16xf32, #tpu.memory_space<vmem>>, vector<8x16xf32>
      tpu.vector_store %arg8[%c0_31, %c0_32], %38 {strides = array<i32>} : memref<8x16xf32, #tpu.memory_space<vmem>>, vector<8x16xf32>,
      %40 = vector.broadcast %23 : vector<5x1x1xf32> to vector<5x1x16xf32>
      %41 = arith.mulf %40, %30 : vector<5x1x16xf32>
      %42 = vector.broadcast %24 : vector<5x1x1xf32> to vector<5x1x16xf32>
      %43 = arith.mulf %42, %32 : vector<5x1x16xf32>
      %44 = arith.addf %41, %43 : vector<5x1x16xf32>
      %cst_33 = arith.constant dense<0.000000e+00> : vector<1x16xf32>
      %45 = vector.multi_reduction <add>, %44, %cst_33 [0] : vector<5x1x16xf32> to vector<1x16xf32>
      %c0_34 = arith.constant 0 : index
      %c0_35 = arith.constant 0 : index
      %46 = vector.load %arg9[%c0_34, %c0_35] : memref<1x16xf32, #tpu.memory_space<vmem>>, vector<1x16xf32>
      tpu.vector_store %arg9[%c0_34, %c0_35], %45 {strides = array<i32>} : memref<1x16xf32, #tpu.memory_space<vmem>>, vector<1x16xf32>,
    } else {
    }
    %c0 = arith.constant 0 : index
    %c0_1 = arith.constant 0 : index
    %c0_2 = arith.constant 0 : index
    %3 = vector.load %arg3[%c0, %c0_1, %c0_2] : memref<1x8x8xf32, #tpu.memory_space<vmem>>, vector<1x8x8xf32>
    %4 = vector.shape_cast %3 : vector<1x8x8xf32> to vector<8x8xf32>
    %c0_3 = arith.constant 0 : index
    %c0_4 = arith.constant 0 : index
    %5 = vector.load %arg8[%c0_3, %c0_4] : memref<8x16xf32, #tpu.memory_space<vmem>>, vector<8x16xf32>
    %cst = arith.constant dense<0.000000e+00> : vector<8x16xf32>
    %6 = tpu.matmul %4, %5, %cst {dimension_numbers = #tpu.dot_dimension_numbers<[1], [0], [0], [1], [0, 0, 1, 1], [], []>} : vector<8x8xf32>, vector<8x16xf32>, vector<8x16xf32> -> vector<8x16xf32>
    %c0_5 = arith.constant 0 : index
    %c0_6 = arith.constant 0 : index
    %7 = vector.load %arg9[%c0_5, %c0_6] : memref<1x16xf32, #tpu.memory_space<vmem>>, vector<1x16xf32>
    %8 = vector.broadcast %7 : vector<1x16xf32> to vector<8x16xf32>
    %9 = arith.addf %6, %8 : vector<8x16xf32>
    %c0_7 = arith.constant 0 : index
    %c0_8 = arith.constant 0 : index
    %c0_9 = arith.constant 0 : index
    %10 = vector.load %arg7[%c0_7, %c0_8, %c0_9] : memref<1x8x16xf32, #tpu.memory_space<vmem>>, vector<1x8x16xf32>
    %11 = vector.shape_cast %10 : vector<1x8x16xf32> to vector<8x16xf32>
    %12 = vector.shape_cast %9 : vector<8x16xf32> to vector<1x8x16xf32>
    tpu.vector_store %arg7[%c0_7, %c0_8, %c0_9], %12 {strides = array<i32>} : memref<1x8x16xf32, #tpu.memory_space<vmem>>, vector<1x8x16xf32>,
    return
  }
  func.func @transform_0(%arg0: i32, %arg1: i32) -> i32 {
    %c0_i32 = arith.constant 0 : i32
    %c0_i32_0 = arith.constant 0 : i32
    return %c0_i32 : i32
  }
  func.func @transform_1(%arg0: i32, %arg1: i32) -> (i32, i32, i32) {
    %c0_i32 = arith.constant 0 : i32
    %c0_i32_0 = arith.constant 0 : i32
    return %arg0, %arg1, %c0_i32 : i32, i32, i32
  }
  func.func @transform_2(%arg0: i32, %arg1: i32) -> (i32, i32, i32) {
    %c0_i32 = arith.constant 0 : i32
    %c0_i32_0 = arith.constant 0 : i32
    %c0_i32_1 = arith.constant 0 : i32
    %c0_i32_2 = arith.constant 0 : i32
    return %c0_i32, %c0_i32_0, %c0_i32_1 : i32, i32, i32
  }
  func.func @transform_3(%arg0: i32, %arg1: i32) -> (i32, i32, i32, i32) {
    %c0_i32 = arith.constant 0 : i32
    %c0_i32_0 = arith.constant 0 : i32
    %c0_i32_1 = arith.constant 0 : i32
    %c0_i32_2 = arith.constant 0 : i32
    %c0_i32_3 = arith.constant 0 : i32
    return %c0_i32, %c0_i32_0, %c0_i32_1, %c0_i32_2 : i32, i32, i32, i32
  }
  func.func @transform_4(%arg0: i32, %arg1: i32) -> (i32, i32, i32, i32) {
    %c0_i32 = arith.constant 0 : i32
    %c0_i32_0 = arith.constant 0 : i32
    %c0_i32_1 = arith.constant 0 : i32
    %c0_i32_2 = arith.constant 0 : i32
    %c0_i32_3 = arith.constant 0 : i32
    return %c0_i32, %c0_i32_0, %c0_i32_1, %c0_i32_2 : i32, i32, i32, i32
  }
  func.func @transform_5(%arg0: i32, %arg1: i32) -> (i32, i32, i32) {
    %c0_i32 = arith.constant 0 : i32
    %c0_i32_0 = arith.constant 0 : i32
    return %arg0, %arg1, %c0_i32 : i32, i32, i32
  }
}

</mosaic_0001>

<llo_original>
// kernel: tpu_custom_call.1
$region0: #{tpu_custom_call.1}
  #allocation0 [shape = 'u32[]', space=smem, size = 0x4, offset = 0x4, fixed_abs, tag = 'smem constant byte address 0x4 - core index']
  #allocation1 [shape = 'u32[144,128]{1,0:T(1,128)}', space=vmem, size = 0x12000, scoped, tag = 'internal scratch']
  #allocation2 [shape = 'f32[8,16]{1,0:T(8,128)}', space=vmem, size = 0x1000, scoped, tag = 'scratch operand']
  #allocation3 [shape = 'f32[1,16]{1,0:T(1,128)}', space=vmem, size = 0x200, scoped, tag = 'scratch operand']
  %s0 = inlined_call_operand.vmem [shape: f32[3], index: 0, kind: input, shape index: {}]
  %s1 = inlined_call_operand.vmem [shape: f32[1,8,8], index: 1, kind: input, shape index: {}]
  %s2 = inlined_call_operand.vmem [shape: f32[5,1,1], index: 2, kind: input, shape index: {}]
  %s3 = inlined_call_operand.hbm [shape: f32[2,5,8,16], index: 3, kind: input, shape index: {}]
  %s4 = inlined_call_operand.vmem [shape: f32[2,5,1,16], index: 4, kind: input, shape index: {}]
  %s5 = inlined_call_operand.hbm [shape: f32[1,8,16], index: 5, kind: output, shape index: {}]
  %s6 = sld [smem:[#allocation0]]
  $region42: #{tpu_custom_call.1} parent=0
    _
  %s8 = ssub.s32 1, %s6
  %s9 = scalar_select 0, %s8, %s6
  $region1: #{tpu_custom_call.1} parent=0
    #allocation4 [shape = 'u8[512]{0}', space=smem, size = 0x200, scoped, tag = 'input window, operand 0, single buffered']
    #allocation5 [shape = 's32[1]{0}', space=sflag, size = 0x4, scoped, tag = 'scoped memory for tpu_custom_call.1']
    #allocation6 [shape = 's32[1]{0}', space=sflag, size = 0x4, scoped, tag = 'scoped memory for tpu_custom_call.1']
    #allocation7 [shape = 's32[1]{0}', space=sflag, size = 0x4, scoped, tag = 'scoped memory for tpu_custom_call.1']
    #allocation8 [shape = 'u8[40960]{0}', space=vmem, size = 0xa000, scoped, tag = 'input window, operand 3, single buffered']
    #allocation9 [shape = 'u8[4096]{0}', space=vmem, size = 0x1000, scoped, tag = 'output window, operand 0, single buffered']
    %10 = vsyncpa [#allocation7], 0
    %11 = vsyncpa [#allocation5], 0
    %12 = vsyncpa [#allocation6], 0
    // Predicated region
    $region2: #{tpu_custom_call.1} parent=1 // pred_check
      _
    $region3: #{tpu_custom_call.1} parent=1 // pred_check_branch
      %14 = sbr.rel (0) target = $region5
    $region4: #{tpu_custom_call.1} parent=1 // pred_region
      %s16 = ssub.s32 16, 16
      %17 = vsyncadd [#allocation7], %s16
      %s19 = sshll.u32 %s0, 4
      %s20 = int_to_ptr.vmem [resolvable:$true] %s19
      %22 = dma.vmem_to_smem %s20, 16, [#allocation4], [#allocation7]
    $region5: #{tpu_custom_call.1} parent=1 // pred_fallthru
      _
    // Predicated region
    $region6: #{tpu_custom_call.1} parent=1 // pred_check
      _
    $region7: #{tpu_custom_call.1} parent=1 // pred_check_branch
      %24 = sbr.rel (0) target = $region9
    $region8: #{tpu_custom_call.1} parent=1 // pred_region
      _
    $region9: #{tpu_custom_call.1} parent=1 // pred_fallthru
      _
    // Predicated region
    $region10: #{tpu_custom_call.1} parent=1 // pred_check
      _
    $region11: #{tpu_custom_call.1} parent=1 // pred_check_branch
      %26 = sbr.rel (0) target = $region13
    $region12: #{tpu_custom_call.1} parent=1 // pred_region
      _
    $region13: #{tpu_custom_call.1} parent=1 // pred_fallthru
      _
    // Predicated region
    $region14: #{tpu_custom_call.1} parent=1 // pred_check
      _
    $region15: #{tpu_custom_call.1} parent=1 // pred_check_branch
      %28 = sbr.rel (0) target = $region17
    $region16: #{tpu_custom_call.1} parent=1 // pred_region
      %s30 = ssub.s32 1280, 1280
      %31 = vsyncadd [#allocation5], %s30
      %s32 = sshll.u32 [#allocation8], 4
      %s33 = int_to_ptr.vmem [resolvable:$true] %s32
      %38 = dma.hbm_to_vmem [thread:$0]  %s3, 1280, %s33, [#allocation5], 128, 128, 8
    $region17: #{tpu_custom_call.1} parent=1 // pred_fallthru
      _
    // Predicated region
    $region18: #{tpu_custom_call.1} parent=1 // pred_check
      _
    $region19: #{tpu_custom_call.1} parent=1 // pred_check_branch
      %40 = sbr.rel (0) target = $region21
    $region20: #{tpu_custom_call.1} parent=1 // pred_region
      _
    $region21: #{tpu_custom_call.1} parent=1 // pred_fallthru
      _
    // Predicated region
    $region22: #{tpu_custom_call.1} parent=1 // pred_check
      _
    $region23: #{tpu_custom_call.1} parent=1 // pred_check_branch
      %42 = sbr.rel (0) target = $region25
    $region24: #{tpu_custom_call.1} parent=1 // pred_region
      %43 = dma.done [#allocation7], 16
    $region25: #{tpu_custom_call.1} parent=1 // pred_fallthru
      _
    // Predicated region
    $region26: #{tpu_custom_call.1} parent=1 // pred_check
      _
    $region27: #{tpu_custom_call.1} parent=1 // pred_check_branch
      %45 = sbr.rel (0) target = $region29
    $region28: #{tpu_custom_call.1} parent=1 // pred_region
      %46 = dma.done [#allocation5], 1280
    $region29: #{tpu_custom_call.1} parent=1 // pred_fallthru
      _
    %47 = sfence
    %p48 = scmp.eq.s32.totalorder 0, 0
    // Predicated region
    $region30: #{tpu_custom_call.1} parent=1 // pred_check
      %p49 = pneg %p48
    $region31: #{tpu_custom_call.1} parent=1 // pred_check_branch
      %51 = sbr.rel (%p49) target = $region33
    $region32: #{tpu_custom_call.1} parent=1 // pred_region
      %s52 = sld [smem:[#allocation4]]
      %s53 = sld [smem:[#allocation4 + $0x1]]
      %s54 = sadd.s32 0, 2
      %s55 = sld [smem:[#allocation4 + %s54]]
      %s56 = smul.f32 %s55, %s52
      %s57 = sadd.f32 %s56, %s53
      %v58 = vld [vmem:[%s2] sm:$0x1]
      %v59 = vld [vmem:[%s2 + $0x1] sm:$0x1]
      %v60 = vld [vmem:[%s2 + $0x2] sm:$0x1]
      %v61 = vld [vmem:[%s2 + $0x3] sm:$0x1]
      %v62 = vld [vmem:[%s2 + $0x4] sm:$0x1]
      %v63 = vstv %s57
      %v64 = vmul.f32 %v63, %v58
      %v65 = vmul.f32 %v63, %v59
      %v66 = vmul.f32 %v63, %v60
      %v67 = vmul.f32 %v63, %v61
      %v68 = vmul.f32 %v63, %v62
      %v69 = vand.u32 2147483647, %v64
      %vm70 = vcmp.le.f32.partialorder %v69, 0.7853982
      %vm71 = vcmp.lt.s32.totalorder %v64, 0
      %v72 = vand.u32 %v64, 2139095040
      %v73 = vshrl.u32 %v72, 23
      %v74 = vsub.s32 %v73, 127
      %v75 = vand.u32 2147483647, %v64
      %v76 = vand.u32 %v75, 8388607
      %v77 = vor.u32 %v76, 8388608
      %v78 = vsub.s32 0, %v77
      %v79 = vadd.s32 %v74, 1
      %vm80 = vcmp.gt.s32.totalorder %v79, 0
      %v81 = vsel %vm80, %v79, 0
      %v82 = vshrl.u32 %v81, 5
      %v83 = vand.u32 %v81, 31
      %v84 = vsub.s32 32, %v83
      %v85 = vshrl.u32 683565275, %v84
      %v86 = vshll.u32 683565275, %v83
      %v87 = vshrl.u32 2475754826, %v84
      %v88 = vor.u32 %v86, %v87
      %v89 = vshll.u32 2475754826, %v83
      %v90 = vshrl.u32 2131351028, %v84
      %v91 = vor.u32 %v89, %v90
      %v92 = vshll.u32 2131351028, %v83
      %v93 = vshrl.u32 2102212464, %v84
      %v94 = vor.u32 %v92, %v93
      %v95 = vshll.u32 2102212464, %v83
      %v96 = vshrl.u32 920167782, %v84
      %v97 = vor.u32 %v95, %v96
      %v98 = vshll.u32 920167782, %v83
      %v99 = vshrl.u32 1326507024, %v84
      %v100 = vor.u32 %v98, %v99
      %vm101 = vcmp.lt.s32.totalorder %v82, 1
      %vm102 = vcmp.lt.s32.totalorder %v82, 2
      %vm103 = vcmp.lt.s32.totalorder %v82, 3
      %vm104 = vcmp.lt.s32.totalorder %v82, 4
      %v105 = vsel %vm101, %v85, %v88
      %v106 = vsel %vm104, %v94, 2102212464
      %v107 = vsel %vm103, %v91, %v106
      %v108 = vsel %vm102, %v105, %v107
      %v109 = vsel %vm101, %v88, %v91
      %v110 = vsel %vm104, %v97, 920167782
      %v111 = vsel %vm103, %v94, %v110
      %v112 = vsel %vm102, %v109, %v111
      %v113 = vsel %vm101, %v91, %v94
      %v114 = vsel %vm104, %v100, 1326507024
      %v115 = vsel %vm103, %v97, %v114
      %v116 = vsel %vm102, %v113, %v115
      %v117 = vshll.u32 %v77, 8
      %v118 = vmul.u32.u64.compose %v117, %v116
      %v119 = vextract.low.u32 %v118
      %v120 = vextract.high.u32 %v118
      %v121 = vmul.u32.u64.compose %v117, %v112
      %v122 = vextract.low.u32 %v121
      %v123 = vextract.high.u32 %v121
      %v124 = vmul.u32 %v117, %v108
      %v125 = vadd.s32 %v120, %v122
      %vm126 = vc.u32 %v120, %v122
      %v127 = vadd.s32 %v123, 1
      %v128 = vsel %vm126, %v127, %v123
      %v129 = vadd.s32 %v124, %v128
      %v130 = vadd.s32 %v129, 536870912
      %v131 = vshrl.u32 %v130, 30
      %v132 = vshll.u32 %v131, 30
      %v133 = vsub.s32 %v129, %v132
      %vm134 = vcmp.lt.s32.totalorder %v133, 0
      %v135 = vsub.s32 0, %v133
      %v136 = vsel %vm134, %v135, %v133
      %v137 = vclz %v136
      %v138 = vsub.s32 %v137, 2
      %vm139 = vcmp.gt.s32.totalorder 0, %v138
      %v140 = vsel %vm139, 0, %v138
      %v141 = vsub.s32 32, %v140
      %v142 = vshll.u32 %v133, %v140
      %v143 = vshrl.u32 %v125, %v141
      %v144 = vor.u32 %v142, %v143
      %v145 = vsub.s32 4294967266, %v140
      %v146 = vadd.s32 %v145, 127
      %v147 = vshll.u32 %v146, 23
      %v148 = vor.u32 4788187, %v147
      %v149 = vand.u32 2147483647, %v148
      %v151 = vcvt.s32.f32 %v144
      %v152 = vmul.f32 %v151, %v149
      %v153 = vxor.u32 %v152, 2147483648
      %v154 = vsel %vm71, %v153, %v152
      %v155 = vsub.s32 4, %v131
      %v156 = vsel %vm71, %v155, %v131
      %v157 = vsel %vm70, %v64, %v154
      %v158 = vsel %vm70, 0, %v156
      %v159 = vcosq.f32.pop %v157
      %v160 = vsinq.f32.pop %v157
      %vm161 = vweird.f32 %v64
      %v162 = vand.u32 %v158, 3
      %vm163 = vcmp.lt.s32.totalorder %v162, 2
      %vm164 = vcmp.eq.s32.totalorder %v162, 0
      %v165 = vxor.u32 %v160, 2147483648
      %v166 = vsel %vm164, %v159, %v165
      %vm167 = vcmp.eq.s32.totalorder %v162, 2
      %v168 = vxor.u32 %v159, 2147483648
      %v169 = vsel %vm167, %v168, %v160
      %v170 = vsel %vm163, %v166, %v169
      %v171 = vsel %vm161, nan, %v170
      %v172 = vand.u32 2147483647, %v65
      %vm173 = vcmp.le.f32.partialorder %v172, 0.7853982
      %vm174 = vcmp.lt.s32.totalorder %v65, 0
      %v175 = vand.u32 %v65, 2139095040
      %v176 = vshrl.u32 %v175, 23
      %v177 = vsub.s32 %v176, 127
      %v178 = vand.u32 2147483647, %v65
      %v179 = vand.u32 %v178, 8388607
      %v180 = vor.u32 %v179, 8388608
      %v181 = vsub.s32 0, %v180
      %v182 = vadd.s32 %v177, 1
      %vm183 = vcmp.gt.s32.totalorder %v182, 0
      %v184 = vsel %vm183, %v182, 0
      %v185 = vshrl.u32 %v184, 5
      %v186 = vand.u32 %v184, 31
      %v187 = vsub.s32 32, %v186
      %v188 = vshrl.u32 683565275, %v187
      %v189 = vshll.u32 683565275, %v186
      %v190 = vshrl.u32 2475754826, %v187
      %v191 = vor.u32 %v189, %v190
      %v192 = vshll.u32 2475754826, %v186
      %v193 = vshrl.u32 2131351028, %v187
      %v194 = vor.u32 %v192, %v193
      %v195 = vshll.u32 2131351028, %v186
      %v196 = vshrl.u32 2102212464, %v187
      %v197 = vor.u32 %v195, %v196
      %v198 = vshll.u32 2102212464, %v186
      %v199 = vshrl.u32 920167782, %v187
      %v200 = vor.u32 %v198, %v199
      %v201 = vshll.u32 920167782, %v186
      %v202 = vshrl.u32 1326507024, %v187
      %v203 = vor.u32 %v201, %v202
      %vm204 = vcmp.lt.s32.totalorder %v185, 1
      %vm205 = vcmp.lt.s32.totalorder %v185, 2
      %vm206 = vcmp.lt.s32.totalorder %v185, 3
      %vm207 = vcmp.lt.s32.totalorder %v185, 4
      %v208 = vsel %vm204, %v188, %v191
      %v209 = vsel %vm207, %v197, 2102212464
      %v210 = vsel %vm206, %v194, %v209
      %v211 = vsel %vm205, %v208, %v210
      %v212 = vsel %vm204, %v191, %v194
      %v213 = vsel %vm207, %v200, 920167782
      %v214 = vsel %vm206, %v197, %v213
      %v215 = vsel %vm205, %v212, %v214
      %v216 = vsel %vm204, %v194, %v197
      %v217 = vsel %vm207, %v203, 1326507024
      %v218 = vsel %vm206, %v200, %v217
      %v219 = vsel %vm205, %v216, %v218
      %v220 = vshll.u32 %v180, 8
      %v221 = vmul.u32.u64.compose %v220, %v219
      %v222 = vextract.low.u32 %v221
      %v223 = vextract.high.u32 %v221
      %v224 = vmul.u32.u64.compose %v220, %v215
      %v225 = vextract.low.u32 %v224
      %v226 = vextract.high.u32 %v224
      %v227 = vmul.u32 %v220, %v211
      %v228 = vadd.s32 %v223, %v225
      %vm229 = vc.u32 %v223, %v225
      %v230 = vadd.s32 %v226, 1
      %v231 = vsel %vm229, %v230, %v226
      %v232 = vadd.s32 %v227, %v231
      %v233 = vadd.s32 %v232, 536870912
      %v234 = vshrl.u32 %v233, 30
      %v235 = vshll.u32 %v234, 30
      %v236 = vsub.s32 %v232, %v235
      %vm237 = vcmp.lt.s32.totalorder %v236, 0
      %v238 = vsub.s32 0, %v236
      %v239 = vsel %vm237, %v238, %v236
      %v240 = vclz %v239
      %v241 = vsub.s32 %v240, 2
      %vm242 = vcmp.gt.s32.totalorder 0, %v241
      %v243 = vsel %vm242, 0, %v241
      %v244 = vsub.s32 32, %v243
      %v245 = vshll.u32 %v236, %v243
      %v246 = vshrl.u32 %v228, %v244
      %v247 = vor.u32 %v245, %v246
      %v248 = vsub.s32 4294967266, %v243
      %v249 = vadd.s32 %v248, 127
      %v250 = vshll.u32 %v249, 23
      %v251 = vor.u32 4788187, %v250
      %v252 = vand.u32 2147483647, %v251
      %v254 = vcvt.s32.f32 %v247
      %v255 = vmul.f32 %v254, %v252
      %v256 = vxor.u32 %v255, 2147483648
      %v257 = vsel %vm174, %v256, %v255
      %v258 = vsub.s32 4, %v234
      %v259 = vsel %vm174, %v258, %v234
      %v260 = vsel %vm173, %v65, %v257
      %v261 = vsel %vm173, 0, %v259
      %v262 = vcosq.f32.pop %v260
      %v263 = vsinq.f32.pop %v260
      %vm264 = vweird.f32 %v65
      %v265 = vand.u32 %v261, 3
      %vm266 = vcmp.lt.s32.totalorder %v265, 2
      %vm267 = vcmp.eq.s32.totalorder %v265, 0
      %v268 = vxor.u32 %v263, 2147483648
      %v269 = vsel %vm267, %v262, %v268
      %vm270 = vcmp.eq.s32.totalorder %v265, 2
      %v271 = vxor.u32 %v262, 2147483648
      %v272 = vsel %vm270, %v271, %v263
      %v273 = vsel %vm266, %v269, %v272
      %v274 = vsel %vm264, nan, %v273
      %v275 = vand.u32 2147483647, %v66
      %vm276 = vcmp.le.f32.partialorder %v275, 0.7853982
      %vm277 = vcmp.lt.s32.totalorder %v66, 0
      %v278 = vand.u32 %v66, 2139095040
      %v279 = vshrl.u32 %v278, 23
      %v280 = vsub.s32 %v279, 127
      %v281 = vand.u32 2147483647, %v66
      %v282 = vand.u32 %v281, 8388607
      %v283 = vor.u32 %v282, 8388608
      %v284 = vsub.s32 0, %v283
      %v285 = vadd.s32 %v280, 1
      %vm286 = vcmp.gt.s32.totalorder %v285, 0
      %v287 = vsel %vm286, %v285, 0
      %v288 = vshrl.u32 %v287, 5
      %v289 = vand.u32 %v287, 31
      %v290 = vsub.s32 32, %v289
      %v291 = vshrl.u32 683565275, %v290
      %v292 = vshll.u32 683565275, %v289
      %v293 = vshrl.u32 2475754826, %v290
      %v294 = vor.u32 %v292, %v293
      %v295 = vshll.u32 2475754826, %v289
      %v296 = vshrl.u32 2131351028, %v290
      %v297 = vor.u32 %v295, %v296
      %v298 = vshll.u32 2131351028, %v289
      %v299 = vshrl.u32 2102212464, %v290
      %v300 = vor.u32 %v298, %v299
      %v301 = vshll.u32 2102212464, %v289
      %v302 = vshrl.u32 920167782, %v290
      %v303 = vor.u32 %v301, %v302
      %v304 = vshll.u32 920167782, %v289
      %v305 = vshrl.u32 1326507024, %v290
      %v306 = vor.u32 %v304, %v305
      %vm307 = vcmp.lt.s32.totalorder %v288, 1
      %vm308 = vcmp.lt.s32.totalorder %v288, 2
      %vm309 = vcmp.lt.s32.totalorder %v288, 3
      %vm310 = vcmp.lt.s32.totalorder %v288, 4
      %v311 = vsel %vm307, %v291, %v294
      %v312 = vsel %vm310, %v300, 2102212464
      %v313 = vsel %vm309, %v297, %v312
      %v314 = vsel %vm308, %v311, %v313
      %v315 = vsel %vm307, %v294, %v297
      %v316 = vsel %vm310, %v303, 920167782
      %v317 = vsel %vm309, %v300, %v316
      %v318 = vsel %vm308, %v315, %v317
      %v319 = vsel %vm307, %v297, %v300
      %v320 = vsel %vm310, %v306, 1326507024
      %v321 = vsel %vm309, %v303, %v320
      %v322 = vsel %vm308, %v319, %v321
      %v323 = vshll.u32 %v283, 8
      %v324 = vmul.u32.u64.compose %v323, %v322
      %v325 = vextract.low.u32 %v324
      %v326 = vextract.high.u32 %v324
      %v327 = vmul.u32.u64.compose %v323, %v318
      %v328 = vextract.low.u32 %v327
      %v329 = vextract.high.u32 %v327
      %v330 = vmul.u32 %v323, %v314
      %v331 = vadd.s32 %v326, %v328
      %vm332 = vc.u32 %v326, %v328
      %v333 = vadd.s32 %v329, 1
      %v334 = vsel %vm332, %v333, %v329
      %v335 = vadd.s32 %v330, %v334
      %v336 = vadd.s32 %v335, 536870912
      %v337 = vshrl.u32 %v336, 30
      %v338 = vshll.u32 %v337, 30
      %v339 = vsub.s32 %v335, %v338
      %vm340 = vcmp.lt.s32.totalorder %v339, 0
      %v341 = vsub.s32 0, %v339
      %v342 = vsel %vm340, %v341, %v339
      %v343 = vclz %v342
      %v344 = vsub.s32 %v343, 2
      %vm345 = vcmp.gt.s32.totalorder 0, %v344
      %v346 = vsel %vm345, 0, %v344
      %v347 = vsub.s32 32, %v346
      %v348 = vshll.u32 %v339, %v346
      %v349 = vshrl.u32 %v331, %v347
      %v350 = vor.u32 %v348, %v349
      %v351 = vsub.s32 4294967266, %v346
      %v352 = vadd.s32 %v351, 127
      %v353 = vshll.u32 %v352, 23
      %v354 = vor.u32 4788187, %v353
      %v355 = vand.u32 2147483647, %v354
      %v357 = vcvt.s32.f32 %v350
      %v358 = vmul.f32 %v357, %v355
      %v359 = vxor.u32 %v358, 2147483648
      %v360 = vsel %vm277, %v359, %v358
      %v361 = vsub.s32 4, %v337
      %v362 = vsel %vm277, %v361, %v337
      %v363 = vsel %vm276, %v66, %v360
      %v364 = vsel %vm276, 0, %v362
      %v365 = vcosq.f32.pop %v363
      %v366 = vsinq.f32.pop %v363
      %vm367 = vweird.f32 %v66
      %v368 = vand.u32 %v364, 3
      %vm369 = vcmp.lt.s32.totalorder %v368, 2
      %vm370 = vcmp.eq.s32.totalorder %v368, 0
      %v371 = vxor.u32 %v366, 2147483648
      %v372 = vsel %vm370, %v365, %v371
      %vm373 = vcmp.eq.s32.totalorder %v368, 2
      %v374 = vxor.u32 %v365, 2147483648
      %v375 = vsel %vm373, %v374, %v366
      %v376 = vsel %vm369, %v372, %v375
      %v377 = vsel %vm367, nan, %v376
      %v378 = vand.u32 2147483647, %v67
      %vm379 = vcmp.le.f32.partialorder %v378, 0.7853982
      %vm380 = vcmp.lt.s32.totalorder %v67, 0
      %v381 = vand.u32 %v67, 2139095040
      %v382 = vshrl.u32 %v381, 23
      %v383 = vsub.s32 %v382, 127
      %v384 = vand.u32 2147483647, %v67
      %v385 = vand.u32 %v384, 8388607
      %v386 = vor.u32 %v385, 8388608
      %v387 = vsub.s32 0, %v386
      %v388 = vadd.s32 %v383, 1
      %vm389 = vcmp.gt.s32.totalorder %v388, 0
      %v390 = vsel %vm389, %v388, 0
      %v391 = vshrl.u32 %v390, 5
      %v392 = vand.u32 %v390, 31
      %v393 = vsub.s32 32, %v392
      %v394 = vshrl.u32 683565275, %v393
      %v395 = vshll.u32 683565275, %v392
      %v396 = vshrl.u32 2475754826, %v393
      %v397 = vor.u32 %v395, %v396
      %v398 = vshll.u32 2475754826, %v392
      %v399 = vshrl.u32 2131351028, %v393
      %v400 = vor.u32 %v398, %v399
      %v401 = vshll.u32 2131351028, %v392
      %v402 = vshrl.u32 2102212464, %v393
      %v403 = vor.u32 %v401, %v402
      %v404 = vshll.u32 2102212464, %v392
      %v405 = vshrl.u32 920167782, %v393
      %v406 = vor.u32 %v404, %v405
      %v407 = vshll.u32 920167782, %v392
      %v408 = vshrl.u32 1326507024, %v393
      %v409 = vor.u32 %v407, %v408
      %vm410 = vcmp.lt.s32.totalorder %v391, 1
      %vm411 = vcmp.lt.s32.totalorder %v391, 2
      %vm412 = vcmp.lt.s32.totalorder %v391, 3
      %vm413 = vcmp.lt.s32.totalorder %v391, 4
      %v414 = vsel %vm410, %v394, %v397
      %v415 = vsel %vm413, %v403, 2102212464
      %v416 = vsel %vm412, %v400, %v415
      %v417 = vsel %vm411, %v414, %v416
      %v418 = vsel %vm410, %v397, %v400
      %v419 = vsel %vm413, %v406, 920167782
      %v420 = vsel %vm412, %v403, %v419
      %v421 = vsel %vm411, %v418, %v420
      %v422 = vsel %vm410, %v400, %v403
      %v423 = vsel %vm413, %v409, 1326507024
      %v424 = vsel %vm412, %v406, %v423
      %v425 = vsel %vm411, %v422, %v424
      %v426 = vshll.u32 %v386, 8
      %v427 = vmul.u32.u64.compose %v426, %v425
      %v428 = vextract.low.u32 %v427
      %v429 = vextract.high.u32 %v427
      %v430 = vmul.u32.u64.compose %v426, %v421
      %v431 = vextract.low.u32 %v430
      %v432 = vextract.high.u32 %v430
      %v433 = vmul.u32 %v426, %v417
      %v434 = vadd.s32 %v429, %v431
      %vm435 = vc.u32 %v429, %v431
      %v436 = vadd.s32 %v432, 1
      %v437 = vsel %vm435, %v436, %v432
      %v438 = vadd.s32 %v433, %v437
      %v439 = vadd.s32 %v438, 536870912
      %v440 = vshrl.u32 %v439, 30
      %v441 = vshll.u32 %v440, 30
      %v442 = vsub.s32 %v438, %v441
      %vm443 = vcmp.lt.s32.totalorder %v442, 0
      %v444 = vsub.s32 0, %v442
      %v445 = vsel %vm443, %v444, %v442
      %v446 = vclz %v445
      %v447 = vsub.s32 %v446, 2
      %vm448 = vcmp.gt.s32.totalorder 0, %v447
      %v449 = vsel %vm448, 0, %v447
      %v450 = vsub.s32 32, %v449
      %v451 = vshll.u32 %v442, %v449
      %v452 = vshrl.u32 %v434, %v450
      %v453 = vor.u32 %v451, %v452
      %v454 = vsub.s32 4294967266, %v449
      %v455 = vadd.s32 %v454, 127
      %v456 = vshll.u32 %v455, 23
      %v457 = vor.u32 4788187, %v456
      %v458 = vand.u32 2147483647, %v457
      %v460 = vcvt.s32.f32 %v453
      %v461 = vmul.f32 %v460, %v458
      %v462 = vxor.u32 %v461, 2147483648
      %v463 = vsel %vm380, %v462, %v461
      %v464 = vsub.s32 4, %v440
      %v465 = vsel %vm380, %v464, %v440
      %v466 = vsel %vm379, %v67, %v463
      %v467 = vsel %vm379, 0, %v465
      %v468 = vcosq.f32.pop %v466
      %v469 = vsinq.f32.pop %v466
      %vm470 = vweird.f32 %v67
      %v471 = vand.u32 %v467, 3
      %vm472 = vcmp.lt.s32.totalorder %v471, 2
      %vm473 = vcmp.eq.s32.totalorder %v471, 0
      %v474 = vxor.u32 %v469, 2147483648
      %v475 = vsel %vm473, %v468, %v474
      %vm476 = vcmp.eq.s32.totalorder %v471, 2
      %v477 = vxor.u32 %v468, 2147483648
      %v478 = vsel %vm476, %v477, %v469
      %v479 = vsel %vm472, %v475, %v478
      %v480 = vsel %vm470, nan, %v479
      %v481 = vand.u32 2147483647, %v68
      %vm482 = vcmp.le.f32.partialorder %v481, 0.7853982
      %vm483 = vcmp.lt.s32.totalorder %v68, 0
      %v484 = vand.u32 %v68, 2139095040
      %v485 = vshrl.u32 %v484, 23
      %v486 = vsub.s32 %v485, 127
      %v487 = vand.u32 2147483647, %v68
      %v488 = vand.u32 %v487, 8388607
      %v489 = vor.u32 %v488, 8388608
      %v490 = vsub.s32 0, %v489
      %v491 = vadd.s32 %v486, 1
      %vm492 = vcmp.gt.s32.totalorder %v491, 0
      %v493 = vsel %vm492, %v491, 0
      %v494 = vshrl.u32 %v493, 5
      %v495 = vand.u32 %v493, 31
      %v496 = vsub.s32 32, %v495
      %v497 = vshrl.u32 683565275, %v496
      %v498 = vshll.u32 683565275, %v495
      %v499 = vshrl.u32 2475754826, %v496
      %v500 = vor.u32 %v498, %v499
      %v501 = vshll.u32 2475754826, %v495
      %v502 = vshrl.u32 2131351028, %v496
      %v503 = vor.u32 %v501, %v502
      %v504 = vshll.u32 2131351028, %v495
      %v505 = vshrl.u32 2102212464, %v496
      %v506 = vor.u32 %v504, %v505
      %v507 = vshll.u32 2102212464, %v495
      %v508 = vshrl.u32 920167782, %v496
      %v509 = vor.u32 %v507, %v508
      %v510 = vshll.u32 920167782, %v495
      %v511 = vshrl.u32 1326507024, %v496
      %v512 = vor.u32 %v510, %v511
      %vm513 = vcmp.lt.s32.totalorder %v494, 1
      %vm514 = vcmp.lt.s32.totalorder %v494, 2
      %vm515 = vcmp.lt.s32.totalorder %v494, 3
      %vm516 = vcmp.lt.s32.totalorder %v494, 4
      %v517 = vsel %vm513, %v497, %v500
      %v518 = vsel %vm516, %v506, 2102212464
      %v519 = vsel %vm515, %v503, %v518
      %v520 = vsel %vm514, %v517, %v519
      %v521 = vsel %vm513, %v500, %v503
      %v522 = vsel %vm516, %v509, 920167782
      %v523 = vsel %vm515, %v506, %v522
      %v524 = vsel %vm514, %v521, %v523
      %v525 = vsel %vm513, %v503, %v506
      %v526 = vsel %vm516, %v512, 1326507024
      %v527 = vsel %vm515, %v509, %v526
      %v528 = vsel %vm514, %v525, %v527
      %v529 = vshll.u32 %v489, 8
      %v530 = vmul.u32.u64.compose %v529, %v528
      %v531 = vextract.low.u32 %v530
      %v532 = vextract.high.u32 %v530
      %v533 = vmul.u32.u64.compose %v529, %v524
      %v534 = vextract.low.u32 %v533
      %v535 = vextract.high.u32 %v533
      %v536 = vmul.u32 %v529, %v520
      %v537 = vadd.s32 %v532, %v534
      %vm538 = vc.u32 %v532, %v534
      %v539 = vadd.s32 %v535, 1
      %v540 = vsel %vm538, %v539, %v535
      %v541 = vadd.s32 %v536, %v540
      %v542 = vadd.s32 %v541, 536870912
      %v543 = vshrl.u32 %v542, 30
      %v544 = vshll.u32 %v543, 30
      %v545 = vsub.s32 %v541, %v544
      %vm546 = vcmp.lt.s32.totalorder %v545, 0
      %v547 = vsub.s32 0, %v545
      %v548 = vsel %vm546, %v547, %v545
      %v549 = vclz %v548
      %v550 = vsub.s32 %v549, 2
      %vm551 = vcmp.gt.s32.totalorder 0, %v550
      %v552 = vsel %vm551, 0, %v550
      %v553 = vsub.s32 32, %v552
      %v554 = vshll.u32 %v545, %v552
      %v555 = vshrl.u32 %v537, %v553
      %v556 = vor.u32 %v554, %v555
      %v557 = vsub.s32 4294967266, %v552
      %v558 = vadd.s32 %v557, 127
      %v559 = vshll.u32 %v558, 23
      %v560 = vor.u32 4788187, %v559
      %v561 = vand.u32 2147483647, %v560
      %v563 = vcvt.s32.f32 %v556
      %v564 = vmul.f32 %v563, %v561
      %v565 = vxor.u32 %v564, 2147483648
      %v566 = vsel %vm483, %v565, %v564
      %v567 = vsub.s32 4, %v543
      %v568 = vsel %vm483, %v567, %v543
      %v569 = vsel %vm482, %v68, %v566
      %v570 = vsel %vm482, 0, %v568
      %v571 = vcosq.f32.pop %v569
      %v572 = vsinq.f32.pop %v569
      %vm573 = vweird.f32 %v68
      %v574 = vand.u32 %v570, 3
      %vm575 = vcmp.lt.s32.totalorder %v574, 2
      %vm576 = vcmp.eq.s32.totalorder %v574, 0
      %v577 = vxor.u32 %v572, 2147483648
      %v578 = vsel %vm576, %v571, %v577
      %vm579 = vcmp.eq.s32.totalorder %v574, 2
      %v580 = vxor.u32 %v571, 2147483648
      %v581 = vsel %vm579, %v580, %v572
      %v582 = vsel %vm575, %v578, %v581
      %v583 = vsel %vm573, nan, %v582
      %v584 = vand.u32 2147483647, %v64
      %vm585 = vcmp.le.f32.partialorder %v584, 0.7853982
      %vm586 = vcmp.lt.s32.totalorder %v64, 0
      %v587 = vand.u32 %v64, 2139095040
      %v588 = vshrl.u32 %v587, 23
      %v589 = vsub.s32 %v588, 127
      %v590 = vand.u32 2147483647, %v64
      %v591 = vand.u32 %v590, 8388607
      %v592 = vor.u32 %v591, 8388608
      %v593 = vsub.s32 0, %v592
      %v594 = vadd.s32 %v589, 1
      %vm595 = vcmp.gt.s32.totalorder %v594, 0
      %v596 = vsel %vm595, %v594, 0
      %v597 = vshrl.u32 %v596, 5
      %v598 = vand.u32 %v596, 31
      %v599 = vsub.s32 32, %v598
      %v600 = vshrl.u32 683565275, %v599
      %v601 = vshll.u32 683565275, %v598
      %v602 = vshrl.u32 2475754826, %v599
      %v603 = vor.u32 %v601, %v602
      %v604 = vshll.u32 2475754826, %v598
      %v605 = vshrl.u32 2131351028, %v599
      %v606 = vor.u32 %v604, %v605
      %v607 = vshll.u32 2131351028, %v598
      %v608 = vshrl.u32 2102212464, %v599
      %v609 = vor.u32 %v607, %v608
      %v610 = vshll.u32 2102212464, %v598
      %v611 = vshrl.u32 920167782, %v599
      %v612 = vor.u32 %v610, %v611
      %v613 = vshll.u32 920167782, %v598
      %v614 = vshrl.u32 1326507024, %v599
      %v615 = vor.u32 %v613, %v614
      %vm616 = vcmp.lt.s32.totalorder %v597, 1
      %vm617 = vcmp.lt.s32.totalorder %v597, 2
      %vm618 = vcmp.lt.s32.totalorder %v597, 3
      %vm619 = vcmp.lt.s32.totalorder %v597, 4
      %v620 = vsel %vm616, %v600, %v603
      %v621 = vsel %vm619, %v609, 2102212464
      %v622 = vsel %vm618, %v606, %v621
      %v623 = vsel %vm617, %v620, %v622
      %v624 = vsel %vm616, %v603, %v606
      %v625 = vsel %vm619, %v612, 920167782
      %v626 = vsel %vm618, %v609, %v625
      %v627 = vsel %vm617, %v624, %v626
      %v628 = vsel %vm616, %v606, %v609
      %v629 = vsel %vm619, %v615, 1326507024
      %v630 = vsel %vm618, %v612, %v629
      %v631 = vsel %vm617, %v628, %v630
      %v632 = vshll.u32 %v592, 8
      %v633 = vmul.u32.u64.compose %v632, %v631
      %v634 = vextract.low.u32 %v633
      %v635 = vextract.high.u32 %v633
      %v636 = vmul.u32.u64.compose %v632, %v627
      %v637 = vextract.low.u32 %v636
      %v638 = vextract.high.u32 %v636
      %v639 = vmul.u32 %v632, %v623
      %v640 = vadd.s32 %v635, %v637
      %vm641 = vc.u32 %v635, %v637
      %v642 = vadd.s32 %v638, 1
      %v643 = vsel %vm641, %v642, %v638
      %v644 = vadd.s32 %v639, %v643
      %v645 = vadd.s32 %v644, 536870912
      %v646 = vshrl.u32 %v645, 30
      %v647 = vshll.u32 %v646, 30
      %v648 = vsub.s32 %v644, %v647
      %vm649 = vcmp.lt.s32.totalorder %v648, 0
      %v650 = vsub.s32 0, %v648
      %v651 = vsel %vm649, %v650, %v648
      %v652 = vclz %v651
      %v653 = vsub.s32 %v652, 2
      %vm654 = vcmp.gt.s32.totalorder 0, %v653
      %v655 = vsel %vm654, 0, %v653
      %v656 = vsub.s32 32, %v655
      %v657 = vshll.u32 %v648, %v655
      %v658 = vshrl.u32 %v640, %v656
      %v659 = vor.u32 %v657, %v658
      %v660 = vsub.s32 4294967266, %v655
      %v661 = vadd.s32 %v660, 127
      %v662 = vshll.u32 %v661, 23
      %v663 = vor.u32 4788187, %v662
      %v664 = vand.u32 2147483647, %v663
      %v666 = vcvt.s32.f32 %v659
      %v667 = vmul.f32 %v666, %v664
      %v668 = vxor.u32 %v667, 2147483648
      %v669 = vsel %vm586, %v668, %v667
      %v670 = vsub.s32 4, %v646
      %v671 = vsel %vm586, %v670, %v646
      %v672 = vsel %vm585, %v64, %v669
      %v673 = vsel %vm585, 0, %v671
      %v674 = vcosq.f32.pop %v672
      %v675 = vsinq.f32.pop %v672
      %vm676 = vweird.f32 %v64
      %v677 = vadd.s32 %v673, 3
      %v678 = vand.u32 %v677, 3
      %vm679 = vcmp.lt.s32.totalorder %v678, 2
      %vm680 = vcmp.eq.s32.totalorder %v678, 0
      %v681 = vxor.u32 %v675, 2147483648
      %v682 = vsel %vm680, %v674, %v681
      %vm683 = vcmp.eq.s32.totalorder %v678, 2
      %v684 = vxor.u32 %v674, 2147483648
      %v685 = vsel %vm683, %v684, %v675
      %v686 = vsel %vm679, %v682, %v685
      %v687 = vsel %vm676, nan, %v686
      %v688 = vand.u32 2147483647, %v65
      %vm689 = vcmp.le.f32.partialorder %v688, 0.7853982
      %vm690 = vcmp.lt.s32.totalorder %v65, 0
      %v691 = vand.u32 %v65, 2139095040
      %v692 = vshrl.u32 %v691, 23
      %v693 = vsub.s32 %v692, 127
      %v694 = vand.u32 2147483647, %v65
      %v695 = vand.u32 %v694, 8388607
      %v696 = vor.u32 %v695, 8388608
      %v697 = vsub.s32 0, %v696
      %v698 = vadd.s32 %v693, 1
      %vm699 = vcmp.gt.s32.totalorder %v698, 0
      %v700 = vsel %vm699, %v698, 0
      %v701 = vshrl.u32 %v700, 5
      %v702 = vand.u32 %v700, 31
      %v703 = vsub.s32 32, %v702
      %v704 = vshrl.u32 683565275, %v703
      %v705 = vshll.u32 683565275, %v702
      %v706 = vshrl.u32 2475754826, %v703
      %v707 = vor.u32 %v705, %v706
      %v708 = vshll.u32 2475754826, %v702
      %v709 = vshrl.u32 2131351028, %v703
      %v710 = vor.u32 %v708, %v709
      %v711 = vshll.u32 2131351028, %v702
      %v712 = vshrl.u32 2102212464, %v703
      %v713 = vor.u32 %v711, %v712
      %v714 = vshll.u32 2102212464, %v702
      %v715 = vshrl.u32 920167782, %v703
      %v716 = vor.u32 %v714, %v715
      %v717 = vshll.u32 920167782, %v702
      %v718 = vshrl.u32 1326507024, %v703
      %v719 = vor.u32 %v717, %v718
      %vm720 = vcmp.lt.s32.totalorder %v701, 1
      %vm721 = vcmp.lt.s32.totalorder %v701, 2
      %vm722 = vcmp.lt.s32.totalorder %v701, 3
      %vm723 = vcmp.lt.s32.totalorder %v701, 4
      %v724 = vsel %vm720, %v704, %v707
      %v725 = vsel %vm723, %v713, 2102212464
      %v726 = vsel %vm722, %v710, %v725
      %v727 = vsel %vm721, %v724, %v726
      %v728 = vsel %vm720, %v707, %v710
      %v729 = vsel %vm723, %v716, 920167782
      %v730 = vsel %vm722, %v713, %v729
      %v731 = vsel %vm721, %v728, %v730
      %v732 = vsel %vm720, %v710, %v713
      %v733 = vsel %vm723, %v719, 1326507024
      %v734 = vsel %vm722, %v716, %v733
      %v735 = vsel %vm721, %v732, %v734
      %v736 = vshll.u32 %v696, 8
      %v737 = vmul.u32.u64.compose %v736, %v735
      %v738 = vextract.low.u32 %v737
      %v739 = vextract.high.u32 %v737
      %v740 = vmul.u32.u64.compose %v736, %v731
      %v741 = vextract.low.u32 %v740
      %v742 = vextract.high.u32 %v740
      %v743 = vmul.u32 %v736, %v727
      %v744 = vadd.s32 %v739, %v741
      %vm745 = vc.u32 %v739, %v741
      %v746 = vadd.s32 %v742, 1
      %v747 = vsel %vm745, %v746, %v742
      %v748 = vadd.s32 %v743, %v747
      %v749 = vadd.s32 %v748, 536870912
      %v750 = vshrl.u32 %v749, 30
      %v751 = vshll.u32 %v750, 30
      %v752 = vsub.s32 %v748, %v751
      %vm753 = vcmp.lt.s32.totalorder %v752, 0
      %v754 = vsub.s32 0, %v752
      %v755 = vsel %vm753, %v754, %v752
      %v756 = vclz %v755
      %v757 = vsub.s32 %v756, 2
      %vm758 = vcmp.gt.s32.totalorder 0, %v757
      %v759 = vsel %vm758, 0, %v757
      %v760 = vsub.s32 32, %v759
      %v761 = vshll.u32 %v752, %v759
      %v762 = vshrl.u32 %v744, %v760
      %v763 = vor.u32 %v761, %v762
      %v764 = vsub.s32 4294967266, %v759
      %v765 = vadd.s32 %v764, 127
      %v766 = vshll.u32 %v765, 23
      %v767 = vor.u32 4788187, %v766
      %v768 = vand.u32 2147483647, %v767
      %v770 = vcvt.s32.f32 %v763
      %v771 = vmul.f32 %v770, %v768
      %v772 = vxor.u32 %v771, 2147483648
      %v773 = vsel %vm690, %v772, %v771
      %v774 = vsub.s32 4, %v750
      %v775 = vsel %vm690, %v774, %v750
      %v776 = vsel %vm689, %v65, %v773
      %v777 = vsel %vm689, 0, %v775
      %v778 = vcosq.f32.pop %v776
      %v779 = vsinq.f32.pop %v776
      %vm780 = vweird.f32 %v65
      %v781 = vadd.s32 %v777, 3
      %v782 = vand.u32 %v781, 3
      %vm783 = vcmp.lt.s32.totalorder %v782, 2
      %vm784 = vcmp.eq.s32.totalorder %v782, 0
      %v785 = vxor.u32 %v779, 2147483648
      %v786 = vsel %vm784, %v778, %v785
      %vm787 = vcmp.eq.s32.totalorder %v782, 2
      %v788 = vxor.u32 %v778, 2147483648
      %v789 = vsel %vm787, %v788, %v779
      %v790 = vsel %vm783, %v786, %v789
      %v791 = vsel %vm780, nan, %v790
      %v792 = vand.u32 2147483647, %v66
      %vm793 = vcmp.le.f32.partialorder %v792, 0.7853982
      %vm794 = vcmp.lt.s32.totalorder %v66, 0
      %v795 = vand.u32 %v66, 2139095040
      %v796 = vshrl.u32 %v795, 23
      %v797 = vsub.s32 %v796, 127
      %v798 = vand.u32 2147483647, %v66
      %v799 = vand.u32 %v798, 8388607
      %v800 = vor.u32 %v799, 8388608
      %v801 = vsub.s32 0, %v800
      %v802 = vadd.s32 %v797, 1
      %vm803 = vcmp.gt.s32.totalorder %v802, 0
      %v804 = vsel %vm803, %v802, 0
      %v805 = vshrl.u32 %v804, 5
      %v806 = vand.u32 %v804, 31
      %v807 = vsub.s32 32, %v806
      %v808 = vshrl.u32 683565275, %v807
      %v809 = vshll.u32 683565275, %v806
      %v810 = vshrl.u32 2475754826, %v807
      %v811 = vor.u32 %v809, %v810
      %v812 = vshll.u32 2475754826, %v806
      %v813 = vshrl.u32 2131351028, %v807
      %v814 = vor.u32 %v812, %v813
      %v815 = vshll.u32 2131351028, %v806
      %v816 = vshrl.u32 2102212464, %v807
      %v817 = vor.u32 %v815, %v816
      %v818 = vshll.u32 2102212464, %v806
      %v819 = vshrl.u32 920167782, %v807
      %v820 = vor.u32 %v818, %v819
      %v821 = vshll.u32 920167782, %v806
      %v822 = vshrl.u32 1326507024, %v807
      %v823 = vor.u32 %v821, %v822
      %vm824 = vcmp.lt.s32.totalorder %v805, 1
      %vm825 = vcmp.lt.s32.totalorder %v805, 2
      %vm826 = vcmp.lt.s32.totalorder %v805, 3
      %vm827 = vcmp.lt.s32.totalorder %v805, 4
      %v828 = vsel %vm824, %v808, %v811
      %v829 = vsel %vm827, %v817, 2102212464
      %v830 = vsel %vm826, %v814, %v829
      %v831 = vsel %vm825, %v828, %v830
      %v832 = vsel %vm824, %v811, %v814
      %v833 = vsel %vm827, %v820, 920167782
      %v834 = vsel %vm826, %v817, %v833
      %v835 = vsel %vm825, %v832, %v834
      %v836 = vsel %vm824, %v814, %v817
      %v837 = vsel %vm827, %v823, 1326507024
      %v838 = vsel %vm826, %v820, %v837
      %v839 = vsel %vm825, %v836, %v838
      %v840 = vshll.u32 %v800, 8
      %v841 = vmul.u32.u64.compose %v840, %v839
      %v842 = vextract.low.u32 %v841
      %v843 = vextract.high.u32 %v841
      %v844 = vmul.u32.u64.compose %v840, %v835
      %v845 = vextract.low.u32 %v844
      %v846 = vextract.high.u32 %v844
      %v847 = vmul.u32 %v840, %v831
      %v848 = vadd.s32 %v843, %v845
      %vm849 = vc.u32 %v843, %v845
      %v850 = vadd.s32 %v846, 1
      %v851 = vsel %vm849, %v850, %v846
      %v852 = vadd.s32 %v847, %v851
      %v853 = vadd.s32 %v852, 536870912
      %v854 = vshrl.u32 %v853, 30
      %v855 = vshll.u32 %v854, 30
      %v856 = vsub.s32 %v852, %v855
      %vm857 = vcmp.lt.s32.totalorder %v856, 0
      %v858 = vsub.s32 0, %v856
      %v859 = vsel %vm857, %v858, %v856
      %v860 = vclz %v859
      %v861 = vsub.s32 %v860, 2
      %vm862 = vcmp.gt.s32.totalorder 0, %v861
      %v863 = vsel %vm862, 0, %v861
      %v864 = vsub.s32 32, %v863
      %v865 = vshll.u32 %v856, %v863
      %v866 = vshrl.u32 %v848, %v864
      %v867 = vor.u32 %v865, %v866
      %v868 = vsub.s32 4294967266, %v863
      %v869 = vadd.s32 %v868, 127
      %v870 = vshll.u32 %v869, 23
      %v871 = vor.u32 4788187, %v870
      %v872 = vand.u32 2147483647, %v871
      %v874 = vcvt.s32.f32 %v867
      %v875 = vmul.f32 %v874, %v872
      %v876 = vxor.u32 %v875, 2147483648
      %v877 = vsel %vm794, %v876, %v875
      %v878 = vsub.s32 4, %v854
      %v879 = vsel %vm794, %v878, %v854
      %v880 = vsel %vm793, %v66, %v877
      %v881 = vsel %vm793, 0, %v879
      %v882 = vcosq.f32.pop %v880
      %v883 = vsinq.f32.pop %v880
      %vm884 = vweird.f32 %v66
      %v885 = vadd.s32 %v881, 3
      %v886 = vand.u32 %v885, 3
      %vm887 = vcmp.lt.s32.totalorder %v886, 2
      %vm888 = vcmp.eq.s32.totalorder %v886, 0
      %v889 = vxor.u32 %v883, 2147483648
      %v890 = vsel %vm888, %v882, %v889
      %vm891 = vcmp.eq.s32.totalorder %v886, 2
      %v892 = vxor.u32 %v882, 2147483648
      %v893 = vsel %vm891, %v892, %v883
      %v894 = vsel %vm887, %v890, %v893
      %v895 = vsel %vm884, nan, %v894
      %v896 = vand.u32 2147483647, %v67
      %vm897 = vcmp.le.f32.partialorder %v896, 0.7853982
      %vm898 = vcmp.lt.s32.totalorder %v67, 0
      %v899 = vand.u32 %v67, 2139095040
      %v900 = vshrl.u32 %v899, 23
      %v901 = vsub.s32 %v900, 127
      %v902 = vand.u32 2147483647, %v67
      %v903 = vand.u32 %v902, 8388607
      %v904 = vor.u32 %v903, 8388608
      %v905 = vsub.s32 0, %v904
      %v906 = vadd.s32 %v901, 1
      %vm907 = vcmp.gt.s32.totalorder %v906, 0
      %v908 = vsel %vm907, %v906, 0
      %v909 = vshrl.u32 %v908, 5
      %v910 = vand.u32 %v908, 31
      %v911 = vsub.s32 32, %v910
      %v912 = vshrl.u32 683565275, %v911
      %v913 = vshll.u32 683565275, %v910
      %v914 = vshrl.u32 2475754826, %v911
      %v915 = vor.u32 %v913, %v914
      %v916 = vshll.u32 2475754826, %v910
      %v917 = vshrl.u32 2131351028, %v911
      %v918 = vor.u32 %v916, %v917
      %v919 = vshll.u32 2131351028, %v910
      %v920 = vshrl.u32 2102212464, %v911
      %v921 = vor.u32 %v919, %v920
      %v922 = vshll.u32 2102212464, %v910
      %v923 = vshrl.u32 920167782, %v911
      %v924 = vor.u32 %v922, %v923
      %v925 = vshll.u32 920167782, %v910
      %v926 = vshrl.u32 1326507024, %v911
      %v927 = vor.u32 %v925, %v926
      %vm928 = vcmp.lt.s32.totalorder %v909, 1
      %vm929 = vcmp.lt.s32.totalorder %v909, 2
      %vm930 = vcmp.lt.s32.totalorder %v909, 3
      %vm931 = vcmp.lt.s32.totalorder %v909, 4
      %v932 = vsel %vm928, %v912, %v915
      %v933 = vsel %vm931, %v921, 2102212464
      %v934 = vsel %vm930, %v918, %v933
      %v935 = vsel %vm929, %v932, %v934
      %v936 = vsel %vm928, %v915, %v918
      %v937 = vsel %vm931, %v924, 920167782
      %v938 = vsel %vm930, %v921, %v937
      %v939 = vsel %vm929, %v936, %v938
      %v940 = vsel %vm928, %v918, %v921
      %v941 = vsel %vm931, %v927, 1326507024
      %v942 = vsel %vm930, %v924, %v941
      %v943 = vsel %vm929, %v940, %v942
      %v944 = vshll.u32 %v904, 8
      %v945 = vmul.u32.u64.compose %v944, %v943
      %v946 = vextract.low.u32 %v945
      %v947 = vextract.high.u32 %v945
      %v948 = vmul.u32.u64.compose %v944, %v939
      %v949 = vextract.low.u32 %v948
      %v950 = vextract.high.u32 %v948
      %v951 = vmul.u32 %v944, %v935
      %v952 = vadd.s32 %v947, %v949
      %vm953 = vc.u32 %v947, %v949
      %v954 = vadd.s32 %v950, 1
      %v955 = vsel %vm953, %v954, %v950
      %v956 = vadd.s32 %v951, %v955
      %v957 = vadd.s32 %v956, 536870912
      %v958 = vshrl.u32 %v957, 30
      %v959 = vshll.u32 %v958, 30
      %v960 = vsub.s32 %v956, %v959
      %vm961 = vcmp.lt.s32.totalorder %v960, 0
      %v962 = vsub.s32 0, %v960
      %v963 = vsel %vm961, %v962, %v960
      %v964 = vclz %v963
      %v965 = vsub.s32 %v964, 2
      %vm966 = vcmp.gt.s32.totalorder 0, %v965
      %v967 = vsel %vm966, 0, %v965
      %v968 = vsub.s32 32, %v967
      %v969 = vshll.u32 %v960, %v967
      %v970 = vshrl.u32 %v952, %v968
      %v971 = vor.u32 %v969, %v970
      %v972 = vsub.s32 4294967266, %v967
      %v973 = vadd.s32 %v972, 127
      %v974 = vshll.u32 %v973, 23
      %v975 = vor.u32 4788187, %v974
      %v976 = vand.u32 2147483647, %v975
      %v978 = vcvt.s32.f32 %v971
      %v979 = vmul.f32 %v978, %v976
      %v980 = vxor.u32 %v979, 2147483648
      %v981 = vsel %vm898, %v980, %v979
      %v982 = vsub.s32 4, %v958
      %v983 = vsel %vm898, %v982, %v958
      %v984 = vsel %vm897, %v67, %v981
      %v985 = vsel %vm897, 0, %v983
      %v986 = vcosq.f32.pop %v984
      %v987 = vsinq.f32.pop %v984
      %vm988 = vweird.f32 %v67
      %v989 = vadd.s32 %v985, 3
      %v990 = vand.u32 %v989, 3
      %vm991 = vcmp.lt.s32.totalorder %v990, 2
      %vm992 = vcmp.eq.s32.totalorder %v990, 0
      %v993 = vxor.u32 %v987, 2147483648
      %v994 = vsel %vm992, %v986, %v993
      %vm995 = vcmp.eq.s32.totalorder %v990, 2
      %v996 = vxor.u32 %v986, 2147483648
      %v997 = vsel %vm995, %v996, %v987
      %v998 = vsel %vm991, %v994, %v997
      %v999 = vsel %vm988, nan, %v998
      %v1000 = vand.u32 2147483647, %v68
      %vm1001 = vcmp.le.f32.partialorder %v1000, 0.7853982
      %vm1002 = vcmp.lt.s32.totalorder %v68, 0
      %v1003 = vand.u32 %v68, 2139095040
      %v1004 = vshrl.u32 %v1003, 23
      %v1005 = vsub.s32 %v1004, 127
      %v1006 = vand.u32 2147483647, %v68
      %v1007 = vand.u32 %v1006, 8388607
      %v1008 = vor.u32 %v1007, 8388608
      %v1009 = vsub.s32 0, %v1008
      %v1010 = vadd.s32 %v1005, 1
      %vm1011 = vcmp.gt.s32.totalorder %v1010, 0
      %v1012 = vsel %vm1011, %v1010, 0
      %v1013 = vshrl.u32 %v1012, 5
      %v1014 = vand.u32 %v1012, 31
      %v1015 = vsub.s32 32, %v1014
      %v1016 = vshrl.u32 683565275, %v1015
      %v1017 = vshll.u32 683565275, %v1014
      %v1018 = vshrl.u32 2475754826, %v1015
      %v1019 = vor.u32 %v1017, %v1018
      %v1020 = vshll.u32 2475754826, %v1014
      %v1021 = vshrl.u32 2131351028, %v1015
      %v1022 = vor.u32 %v1020, %v1021
      %v1023 = vshll.u32 2131351028, %v1014
      %v1024 = vshrl.u32 2102212464, %v1015
      %v1025 = vor.u32 %v1023, %v1024
      %v1026 = vshll.u32 2102212464, %v1014
      %v1027 = vshrl.u32 920167782, %v1015
      %v1028 = vor.u32 %v1026, %v1027
      %v1029 = vshll.u32 920167782, %v1014
      %v1030 = vshrl.u32 1326507024, %v1015
      %v1031 = vor.u32 %v1029, %v1030
      %vm1032 = vcmp.lt.s32.totalorder %v1013, 1
      %vm1033 = vcmp.lt.s32.totalorder %v1013, 2
      %vm1034 = vcmp.lt.s32.totalorder %v1013, 3
      %vm1035 = vcmp.lt.s32.totalorder %v1013, 4
      %v1036 = vsel %vm1032, %v1016, %v1019
      %v1037 = vsel %vm1035, %v1025, 2102212464
      %v1038 = vsel %vm1034, %v1022, %v1037
      %v1039 = vsel %vm1033, %v1036, %v1038
      %v1040 = vsel %vm1032, %v1019, %v1022
      %v1041 = vsel %vm1035, %v1028, 920167782
      %v1042 = vsel %vm1034, %v1025, %v1041
      %v1043 = vsel %vm1033, %v1040, %v1042
      %v1044 = vsel %vm1032, %v1022, %v1025
      %v1045 = vsel %vm1035, %v1031, 1326507024
      %v1046 = vsel %vm1034, %v1028, %v1045
      %v1047 = vsel %vm1033, %v1044, %v1046
      %v1048 = vshll.u32 %v1008, 8
      %v1049 = vmul.u32.u64.compose %v1048, %v1047
      %v1050 = vextract.low.u32 %v1049
      %v1051 = vextract.high.u32 %v1049
      %v1052 = vmul.u32.u64.compose %v1048, %v1043
      %v1053 = vextract.low.u32 %v1052
      %v1054 = vextract.high.u32 %v1052
      %v1055 = vmul.u32 %v1048, %v1039
      %v1056 = vadd.s32 %v1051, %v1053
      %vm1057 = vc.u32 %v1051, %v1053
      %v1058 = vadd.s32 %v1054, 1
      %v1059 = vsel %vm1057, %v1058, %v1054
      %v1060 = vadd.s32 %v1055, %v1059
      %v1061 = vadd.s32 %v1060, 536870912
      %v1062 = vshrl.u32 %v1061, 30
      %v1063 = vshll.u32 %v1062, 30
      %v1064 = vsub.s32 %v1060, %v1063
      %vm1065 = vcmp.lt.s32.totalorder %v1064, 0
      %v1066 = vsub.s32 0, %v1064
      %v1067 = vsel %vm1065, %v1066, %v1064
      %v1068 = vclz %v1067
      %v1069 = vsub.s32 %v1068, 2
      %vm1070 = vcmp.gt.s32.totalorder 0, %v1069
      %v1071 = vsel %vm1070, 0, %v1069
      %v1072 = vsub.s32 32, %v1071
      %v1073 = vshll.u32 %v1064, %v1071
      %v1074 = vshrl.u32 %v1056, %v1072
      %v1075 = vor.u32 %v1073, %v1074
      %v1076 = vsub.s32 4294967266, %v1071
      %v1077 = vadd.s32 %v1076, 127
      %v1078 = vshll.u32 %v1077, 23
      %v1079 = vor.u32 4788187, %v1078
      %v1080 = vand.u32 2147483647, %v1079
      %v1082 = vcvt.s32.f32 %v1075
      %v1083 = vmul.f32 %v1082, %v1080
      %v1084 = vxor.u32 %v1083, 2147483648
      %v1085 = vsel %vm1002, %v1084, %v1083
      %v1086 = vsub.s32 4, %v1062
      %v1087 = vsel %vm1002, %v1086, %v1062
      %v1088 = vsel %vm1001, %v68, %v1085
      %v1089 = vsel %vm1001, 0, %v1087
      %v1090 = vcosq.f32.pop %v1088
      %v1091 = vsinq.f32.pop %v1088
      %vm1092 = vweird.f32 %v68
      %v1093 = vadd.s32 %v1089, 3
      %v1094 = vand.u32 %v1093, 3
      %vm1095 = vcmp.lt.s32.totalorder %v1094, 2
      %vm1096 = vcmp.eq.s32.totalorder %v1094, 0
      %v1097 = vxor.u32 %v1091, 2147483648
      %v1098 = vsel %vm1096, %v1090, %v1097
      %vm1099 = vcmp.eq.s32.totalorder %v1094, 2
      %v1100 = vxor.u32 %v1090, 2147483648
      %v1101 = vsel %vm1099, %v1100, %v1091
      %v1102 = vsel %vm1095, %v1098, %v1101
      %v1103 = vsel %vm1092, nan, %v1102
      %v1104 = vld [vmem:[#allocation8] sm:$0xff]
      %v1105 = vld [vmem:[#allocation8 + $0x8] sm:$0xff]
      %v1106 = vld [vmem:[#allocation8 + $0x10] sm:$0xff]
      %v1107 = vld [vmem:[#allocation8 + $0x18] sm:$0xff]
      %v1108 = vld [vmem:[#allocation8 + $0x20] sm:$0xff]
      %s1109 = scalar_lea.vmem [#allocation8], 40
      %v1110 = vld [vmem:[%s1109] sm:$0xff]
      %v1111 = vld [vmem:[%s1109 + $0x8] sm:$0xff]
      %v1112 = vld [vmem:[%s1109 + $0x10] sm:$0xff]
      %v1113 = vld [vmem:[%s1109 + $0x18] sm:$0xff]
      %v1114 = vld [vmem:[%s1109 + $0x20] sm:$0xff]
      %v1115 = vld [vmem:[%s4] sm:$0x1]
      %v1116 = vld [vmem:[%s4 + $0x1] sm:$0x1]
      %v1117 = vld [vmem:[%s4 + $0x2] sm:$0x1]
      %v1118 = vld [vmem:[%s4 + $0x3] sm:$0x1]
      %v1119 = vld [vmem:[%s4 + $0x4] sm:$0x1]
      %s1120 = scalar_lea.vmem %s4, 5
      %v1121 = vld [vmem:[%s1120] sm:$0x1]
      %v1122 = vld [vmem:[%s1120 + $0x1] sm:$0x1]
      %v1123 = vld [vmem:[%s1120 + $0x2] sm:$0x1]
      %v1124 = vld [vmem:[%s1120 + $0x3] sm:$0x1]
      %v1125 = vld [vmem:[%s1120 + $0x4] sm:$0x1]
      %v1131 = vlaneseq
      %v1132 = vshrl.u32 %v1131, 7
      %v1133 = vsub.s32 0, %v1132
      %v1134 = vrot.slane %v171, %v1133
      %v1135 = vlaneseq
      %v1136 = vshrl.u32 %v1135, 7
      %v1137 = vsub.s32 0, %v1136
      %v1138 = vrot.slane %v274, %v1137
      %v1139 = vlaneseq
      %v1140 = vshrl.u32 %v1139, 7
      %v1141 = vsub.s32 0, %v1140
      %v1142 = vrot.slane %v377, %v1141
      %v1143 = vlaneseq
      %v1144 = vshrl.u32 %v1143, 7
      %v1145 = vsub.s32 0, %v1144
      %v1146 = vrot.slane %v480, %v1145
      %v1147 = vlaneseq
      %v1148 = vshrl.u32 %v1147, 7
      %v1149 = vsub.s32 0, %v1148
      %v1150 = vrot.slane %v583, %v1149
      %1151 = vset.pattern.permute.xlu0 0
      %1152 = vperm.xlu0 %1151, %v1134
      %v1153 = vpop.permute.xlu0 %1152
      %1155 = vset.pattern.permute.xlu0 0
      %1156 = vperm.xlu0 %1155, %v1138
      %v1157 = vpop.permute.xlu0 %1156
      %1159 = vset.pattern.permute.xlu0 0
      %1160 = vperm.xlu0 %1159, %v1142
      %v1161 = vpop.permute.xlu0 %1160
      %1163 = vset.pattern.permute.xlu0 0
      %1164 = vperm.xlu0 %1163, %v1146
      %v1165 = vpop.permute.xlu0 %1164
      %1167 = vset.pattern.permute.xlu0 0
      %1168 = vperm.xlu0 %1167, %v1150
      %v1169 = vpop.permute.xlu0 %1168
      %v1171 = vmul.f32 %v1153, %v1104
      %v1172 = vmul.f32 %v1157, %v1105
      %v1173 = vmul.f32 %v1161, %v1106
      %v1174 = vmul.f32 %v1165, %v1107
      %v1175 = vmul.f32 %v1169, %v1108
      %v1181 = vlaneseq
      %v1182 = vshrl.u32 %v1181, 7
      %v1183 = vsub.s32 0, %v1182
      %v1184 = vrot.slane %v687, %v1183
      %v1185 = vlaneseq
      %v1186 = vshrl.u32 %v1185, 7
      %v1187 = vsub.s32 0, %v1186
      %v1188 = vrot.slane %v791, %v1187
      %v1189 = vlaneseq
      %v1190 = vshrl.u32 %v1189, 7
      %v1191 = vsub.s32 0, %v1190
      %v1192 = vrot.slane %v895, %v1191
      %v1193 = vlaneseq
      %v1194 = vshrl.u32 %v1193, 7
      %v1195 = vsub.s32 0, %v1194
      %v1196 = vrot.slane %v999, %v1195
      %v1197 = vlaneseq
      %v1198 = vshrl.u32 %v1197, 7
      %v1199 = vsub.s32 0, %v1198
      %v1200 = vrot.slane %v1103, %v1199
      %1201 = vset.pattern.permute.xlu0 0
      %1202 = vperm.xlu0 %1201, %v1184
      %v1203 = vpop.permute.xlu0 %1202
      %1205 = vset.pattern.permute.xlu0 0
      %1206 = vperm.xlu0 %1205, %v1188
      %v1207 = vpop.permute.xlu0 %1206
      %1209 = vset.pattern.permute.xlu0 0
      %1210 = vperm.xlu0 %1209, %v1192
      %v1211 = vpop.permute.xlu0 %1210
      %1213 = vset.pattern.permute.xlu0 0
      %1214 = vperm.xlu0 %1213, %v1196
      %v1215 = vpop.permute.xlu0 %1214
      %1217 = vset.pattern.permute.xlu0 0
      %1218 = vperm.xlu0 %1217, %v1200
      %v1219 = vpop.permute.xlu0 %1218
      %v1221 = vmul.f32 %v1203, %v1110
      %v1222 = vmul.f32 %v1207, %v1111
      %v1223 = vmul.f32 %v1211, %v1112
      %v1224 = vmul.f32 %v1215, %v1113
      %v1225 = vmul.f32 %v1219, %v1114
      %v1226 = vadd.f32 %v1171, %v1221
      %v1227 = vadd.f32 %v1172, %v1222
      %v1228 = vadd.f32 %v1173, %v1223
      %v1229 = vadd.f32 %v1174, %v1224
      %v1230 = vadd.f32 %v1175, %v1225
      %vm1231 = vcmask 130048
      %v1232 = vsel %vm1231, %v1226, 0.0
      %v1233 = vsel %vm1231, %v1227, 0.0
      %v1234 = vadd.f32 %v1232, %v1233
      %v1235 = vsel %vm1231, %v1228, 0.0
      %v1236 = vadd.f32 %v1234, %v1235
      %v1237 = vsel %vm1231, %v1229, 0.0
      %v1238 = vadd.f32 %v1236, %v1237
      %v1239 = vsel %vm1231, %v1230, 0.0
      %v1240 = vadd.f32 %v1238, %v1239
      %1241 = vst.msk [vmem:[#allocation2] sm:$0xff] %vm1231, %v1240
      %1242 = vset.pattern.permute.xlu0 0
      %1243 = vperm.xlu0 %1242, %v171
      %v1244 = vpop.permute.xlu0 %1243
      %v1246 = vlaneseq
      %v1247 = vshrl.u32 %v1246, 7
      %v1248 = vsub.s32 0, %v1247
      %v1249 = vrot.slane %v1244, %v1248
      %1250 = vset.pattern.permute.xlu0 0
      %1251 = vperm.xlu0 %1250, %v274
      %v1252 = vpop.permute.xlu0 %1251
      %v1254 = vlaneseq
      %v1255 = vshrl.u32 %v1254, 7
      %v1256 = vsub.s32 0, %v1255
      %v1257 = vrot.slane %v1252, %v1256
      %1258 = vset.pattern.permute.xlu0 0
      %1259 = vperm.xlu0 %1258, %v377
      %v1260 = vpop.permute.xlu0 %1259
      %v1262 = vlaneseq
      %v1263 = vshrl.u32 %v1262, 7
      %v1264 = vsub.s32 0, %v1263
      %v1265 = vrot.slane %v1260, %v1264
      %1266 = vset.pattern.permute.xlu0 0
      %1267 = vperm.xlu0 %1266, %v480
      %v1268 = vpop.permute.xlu0 %1267
      %v1270 = vlaneseq
      %v1271 = vshrl.u32 %v1270, 7
      %v1272 = vsub.s32 0, %v1271
      %v1273 = vrot.slane %v1268, %v1272
      %1274 = vset.pattern.permute.xlu0 0
      %1275 = vperm.xlu0 %1274, %v583
      %v1276 = vpop.permute.xlu0 %1275
      %v1278 = vlaneseq
      %v1279 = vshrl.u32 %v1278, 7
      %v1280 = vsub.s32 0, %v1279
      %v1281 = vrot.slane %v1276, %v1280
      %v1282 = vmul.f32 %v1249, %v1115
      %v1283 = vmul.f32 %v1257, %v1116
      %v1284 = vmul.f32 %v1265, %v1117
      %v1285 = vmul.f32 %v1273, %v1118
      %v1286 = vmul.f32 %v1281, %v1119
      %1287 = vset.pattern.permute.xlu0 0
      %1288 = vperm.xlu0 %1287, %v687
      %v1289 = vpop.permute.xlu0 %1288
      %v1291 = vlaneseq
      %v1292 = vshrl.u32 %v1291, 7
      %v1293 = vsub.s32 0, %v1292
      %v1294 = vrot.slane %v1289, %v1293
      %1295 = vset.pattern.permute.xlu0 0
      %1296 = vperm.xlu0 %1295, %v791
      %v1297 = vpop.permute.xlu0 %1296
      %v1299 = vlaneseq
      %v1300 = vshrl.u32 %v1299, 7
      %v1301 = vsub.s32 0, %v1300
      %v1302 = vrot.slane %v1297, %v1301
      %1303 = vset.pattern.permute.xlu0 0
      %1304 = vperm.xlu0 %1303, %v895
      %v1305 = vpop.permute.xlu0 %1304
      %v1307 = vlaneseq
      %v1308 = vshrl.u32 %v1307, 7
      %v1309 = vsub.s32 0, %v1308
      %v1310 = vrot.slane %v1305, %v1309
      %1311 = vset.pattern.permute.xlu0 0
      %1312 = vperm.xlu0 %1311, %v999
      %v1313 = vpop.permute.xlu0 %1312
      %v1315 = vlaneseq
      %v1316 = vshrl.u32 %v1315, 7
      %v1317 = vsub.s32 0, %v1316
      %v1318 = vrot.slane %v1313, %v1317
      %1319 = vset.pattern.permute.xlu0 0
      %1320 = vperm.xlu0 %1319, %v1103
      %v1321 = vpop.permute.xlu0 %1320
      %v1323 = vlaneseq
      %v1324 = vshrl.u32 %v1323, 7
      %v1325 = vsub.s32 0, %v1324
      %v1326 = vrot.slane %v1321, %v1325
      %v1327 = vmul.f32 %v1294, %v1121
      %v1328 = vmul.f32 %v1302, %v1122
      %v1329 = vmul.f32 %v1310, %v1123
      %v1330 = vmul.f32 %v1318, %v1124
      %v1331 = vmul.f32 %v1326, %v1125
      %v1332 = vadd.f32 %v1282, %v1327
      %v1333 = vadd.f32 %v1283, %v1328
      %v1334 = vadd.f32 %v1284, %v1329
      %v1335 = vadd.f32 %v1285, %v1330
      %v1336 = vadd.f32 %v1286, %v1331
      %vm1337 = vcmask 122880
      %v1338 = vsel %vm1337, %v1332, 0.0
      %v1339 = vsel %vm1337, %v1333, 0.0
      %v1340 = vadd.f32 %v1338, %v1339
      %v1341 = vsel %vm1337, %v1334, 0.0
      %v1342 = vadd.f32 %v1340, %v1341
      %v1343 = vsel %vm1337, %v1335, 0.0
      %v1344 = vadd.f32 %v1342, %v1343
      %v1345 = vsel %vm1337, %v1336, 0.0
      %v1346 = vadd.f32 %v1344, %v1345
      %1347 = vst.msk [vmem:[#allocation3] sm:$0x1] %vm1337, %v1346
    $region33: #{tpu_custom_call.1} parent=1 // pred_fallthru
      _
    %v1348 = vld [vmem:[%s1] sm:$0xff]
    %v1349 = vld [vmem:[#allocation2] sm:$0xff]
    %v1350 = vld [vmem:[#allocation3] sm:$0x1]
    %v1352 = vlaneseq
    %v1353 = vshrl.u32 %v1352, 7
    %v1354 = vsub.s32 0, %v1353
    %v1355 = vrot.slane %v1350, %v1354
    %vm1357 = vcmask 64512
    %v1359 = vsel %vm1357, %v1348, 0
    %1361 = vmatprep.subr.mxu0 0.0
    %1362 = vmatpush1.msra.mxu0 %v1349
    %1363 = vmatprep.subr.mxu0 0.0
    %1364 = vmatpush1.msra.mxu0 0.0
    %1365 = vmatprep.subr.mxu0 0.0
    %1366 = vmatpush1.msra.mxu0 0.0
    %1367 = vmatprep.subr.mxu0 0.0
    %1368 = vmatpush1.msra.mxu0 0.0
    %1369 = vmatprep.subr.mxu0 0.0
    %1370 = vmatpush1.msra.mxu0 0.0
    %1371 = vmatprep.subr.mxu0 0.0
    %1372 = vmatpush1.msra.mxu0 0.0
    %1373 = vmatprep.subr.mxu0 0.0
    %1374 = vmatpush1.msra.mxu0 0.0
    %1375 = vmatprep.subr.mxu0 0.0
    %1376 = vmatpush1.msra.mxu0 0.0
    %1377 = vmatprep.subr.mxu0 0.0
    %1378 = vmatpush1.msra.mxu0 0.0
    %1379 = vmatprep.subr.mxu0 0.0
    %1380 = vmatpush1.msra.mxu0 0.0
    %1381 = vmatprep.subr.mxu0 0.0
    %1382 = vmatpush1.msra.mxu0 0.0
    %1383 = vmatprep.subr.mxu0 0.0
    %1384 = vmatpush1.msra.mxu0 0.0
    %1385 = vmatprep.subr.mxu0 0.0
    %1386 = vmatpush1.msra.mxu0 0.0
    %1387 = vmatprep.subr.mxu0 0.0
    %1388 = vmatpush1.msra.mxu0 0.0
    %1389 = vmatprep.subr.mxu0 0.0
    %1390 = vmatpush1.msra.mxu0 0.0
    %1391 = vmatprep.subr.mxu0 0.0
    %1392 = vmatpush1.msra.mxu0 0.0
    %1393 = vmatprep.subr.mxu0 0.0
    %1394 = vmatpush1.msra.mxu0 0.0
    %1395 = vmatprep.subr.mxu0 0.0
    %1396 = vmatpush1.msra.mxu0 0.0
    %1397 = vmatprep.subr.mxu0 0.0
    %1398 = vmatpush1.msra.mxu0 0.0
    %1399 = vmatprep.subr.mxu0 0.0
    %1400 = vmatpush1.msra.mxu0 0.0
    %1401 = vmatprep.subr.mxu0 0.0
    %1402 = vmatpush1.msra.mxu0 0.0
    %1403 = vmatprep.subr.mxu0 0.0
    %1404 = vmatpush1.msra.mxu0 0.0
    %1405 = vmatprep.subr.mxu0 0.0
    %1406 = vmatpush1.msra.mxu0 0.0
    %1407 = vmatprep.subr.mxu0 0.0
    %1408 = vmatpush1.msra.mxu0 0.0
    %1409 = vmatprep.subr.mxu0 0.0
    %1410 = vmatpush1.msra.mxu0 0.0
    %1411 = vmatprep.subr.mxu0 0.0
    %1412 = vmatpush1.msra.mxu0 0.0
    %1413 = vmatprep.subr.mxu0 0.0
    %1414 = vmatpush1.msra.mxu0 0.0
    %1415 = vmatprep.subr.mxu0 0.0
    %1416 = vmatpush1.msra.mxu0 0.0
    %1417 = vmatprep.subr.mxu0 0.0
    %1418 = vmatpush1.msra.mxu0 0.0
    %1419 = vmatprep.subr.mxu0 0.0
    %1420 = vmatpush1.msra.mxu0 0.0
    %1421 = vmatprep.subr.mxu0 0.0
    %1422 = vmatpush1.msra.mxu0 0.0
    %1423 = vmatprep.subr.mxu0 0.0
    %1424 = vmatpush1.msra.mxu0 0.0
    %1425 = vmatprep.mubr.f32.mxu0 0.0
    %1426 = vmatmul.mubr.f32.gmra.mrb[0].mxu0 %v1359
    %v1427 = vpop.f32.mrb[0].mxu0
    %v1428 = vadd.f32 %v1355, %v1427
    %v1429 = vpop.f32.mrb[0].mxu0
    %1430 = vdwg.mxu0
    %vm1431 = vcmask 130048
    %1432 = vst.msk [vmem:[#allocation9] sm:$0xff] %vm1431, %v1428
    // Predicated region
    $region34: #{tpu_custom_call.1} parent=1 // pred_check
      _
    $region35: #{tpu_custom_call.1} parent=1 // pred_check_branch
      %1434 = sbr.rel (0) target = $region37
    $region36: #{tpu_custom_call.1} parent=1 // pred_region
      %s1436 = ssub.s32 128, 128
      %1437 = vsyncadd [#allocation6], %s1436
      %s1439 = sshll.u32 [#allocation9], 4
      %s1440 = int_to_ptr.vmem [resolvable:$true] %s1439
      %1442 = dma.vmem_to_hbm [thread:$0]  %s1440, 128, %s5, [#allocation6]
    $region37: #{tpu_custom_call.1} parent=1 // pred_fallthru
      _
    // Predicated region
    $region38: #{tpu_custom_call.1} parent=1 // pred_check
      _
    $region39: #{tpu_custom_call.1} parent=1 // pred_check_branch
      %1444 = sbr.rel (0) target = $region41
    $region40: #{tpu_custom_call.1} parent=1 // pred_region
      %1445 = dma.done [#allocation6], 128
    $region41: #{tpu_custom_call.1} parent=1 // pred_fallthru
      _
    %1446 = vsyncpa [#allocation5], 1
    %1447 = vsyncpa [#allocation6], 1
    %1448 = vsyncpa [#allocation7], 1

</llo_original>
